<compile_context>
chip_gen: v5e
topology: v5e:2x2
jax: 0.10.0
libtpu: 0.0.40
codegen_flags: <defaults>
</compile_context>

<pallas_src>
import functools
import math

import jax
import jax.numpy as jnp
from jax.experimental import pallas as pl
from jax.experimental.pallas import tpu as pltpu

LANE_PAD = 128  # pad every feature/output dim to full 128-lane vregs


def _tree_max(parts):
    """Pairwise (tree) elementwise max over a list of equal-shape arrays."""
    while len(parts) > 1:
        nxt = [jnp.maximum(parts[2 * i], parts[2 * i + 1]) for i in range(len(parts) // 2)]
        if len(parts) % 2:
            nxt.append(parts[-1])
        parts = nxt
    return parts[0]


def _fused_graphsage_kernel(*refs, layer_has_post, num_samples):
    # refs = (feats_ref, *per_layer_refs, out_ref)
    # per layer: idx (self rows then sample-major neighbor rows, shape ((S+1)*n_out, 1)),
    #            w_pool, b_pool, w_fc (stacked, (2*PAD, PAD)), b_fc
    #            (+ gamma, beta, dropout_mask for hidden layers)
    feats_ref = refs[0]
    out_ref = refs[-1]
    rest = refs[1:-1]

    act = feats_ref[...]                                        # (N_0, LANE_PAD) f32
    pos = 0
    for has_post in layer_has_post:                             # statically unrolled
        n_per = 8 if has_post else 5
        lrefs = rest[pos:pos + n_per]
        pos += n_per
        idx_ref, w_pool_ref, b_pool_ref, w_fc_ref, b_fc_ref = lrefs[:5]

        n_in = act.shape[0]                                     # nodes in layer k
        n_rows = idx_ref.shape[0]                               # (S+1) * n_out
        n_out = n_rows // (num_samples + 1)                     # nodes in layer k+1
        act_bf = act.astype(jnp.bfloat16)

        # ---- MaxPoolAggregator fc1 + ReLU on UNIQUE layer-k rows (before gather):
        #      a row-wise linear+ReLU commutes with the row gather.
        h = jnp.dot(act_bf, w_pool_ref[...], preferred_element_type=jnp.float32)
        h = jnp.maximum(h + b_pool_ref[...], 0.0).astype(jnp.bfloat16)      # (n_in, PAD)

        # ---- fused self + neighbor gather: ONE one-hot MXU matmul against [act | h].
        #      One-hot built directly in bf16 from a single iota.
        iota = jax.lax.broadcasted_iota(jnp.int32, (n_rows, n_in), 1)
        onehot = (idx_ref[...] == iota).astype(jnp.bfloat16)                # (n_rows, n_in)
        rhs = jnp.concatenate([act_bf, h], axis=1)                          # (n_in, 2*PAD)
        full = jnp.dot(onehot, rhs, preferred_element_type=jnp.float32)     # (n_rows, 2*PAD)

        self_g = full[:n_out, :LANE_PAD]                                    # (n_out, PAD)
        # elementwise max over samples (tree reduction), neighbor columns only
        agg = _tree_max([full[(1 + s) * n_out:(2 + s) * n_out, LANE_PAD:]
                         for s in range(num_samples)])                      # (n_out, PAD)

        # ---- fc over cat([self, agg], dim=1): single K=2*PAD matmul (stacked weight)
        fc_in = jnp.concatenate([self_g, agg], axis=1).astype(jnp.bfloat16)  # (n_out, 2*PAD)
        y = (jnp.dot(fc_in, w_fc_ref[...], preferred_element_type=jnp.float32)
             + b_fc_ref[...])                                                # (n_out, PAD)

        if has_post:
            gamma_ref, beta_ref, mask_ref = lrefs[5], lrefs[6], lrefs[7]
            # ReLU
            y = jnp.maximum(y, 0.0)
            # BatchNorm1d (training-mode batch statistics, biased variance, eps=1e-5)
            mean = jnp.mean(y, axis=0, keepdims=True)
            d = y - mean
            var = jnp.mean(d * d, axis=0, keepdims=True)
            y = d * jax.lax.rsqrt(var + 1e-5)
            # gamma/beta are pre-scaled by 1/keep_p host-side; dropout is one multiply
            y = (y * gamma_ref[...] + beta_ref[...]) * mask_ref[...]
            # row L2 normalize: y / (||y||_2 + 1e-6)
            norm = jnp.sqrt(jnp.sum(y * y, axis=1, keepdims=True))
            y = y * (1.0 / (norm + 1e-6))

        act = y

    out_ref[...] = act.astype(out_ref.dtype)


def _pad_to(x, rows, cols):
    return jnp.pad(x, ((0, rows - x.shape[0]), (0, cols - x.shape[1])))


def graphsage_forward(features, self_indices, neigh_indices, params, dropout_rng,
                      *, num_samples, dropout_p=0.5):
    """Fused GraphSage forward. Returns (len(node_layers[-1]), output_dim)."""
    num_layers = len(params)
    keep_p = 1.0 - dropout_p
    n0 = features.shape[0]
    feats_p = _pad_to(features.astype(jnp.float32), n0, LANE_PAD)

    inputs = [feats_p]
    layer_has_post = []
    total_flops = 0
    total_trans = 0
    for k in range(num_layers):
        p = params[k]
        d_in = p["w_pool_t"].shape[0]
        has_post = (k + 1 < num_layers)
        layer_has_post.append(has_post)

        n_in_k = n0 if k == 0 else self_indices[k - 1].shape[0]
        n_out_k = self_indices[k].shape[0]

        self_idx = self_indices[k].astype(jnp.int32).reshape(-1, 1)         # (n_out, 1)
        neigh_flat = neigh_indices[k].astype(jnp.int32).T.reshape(-1, 1)    # (S*n_out, 1) sample-major
        idx = jnp.concatenate([self_idx, neigh_flat], axis=0)               # ((S+1)*n_out, 1)

        w_pool = _pad_to(p["w_pool_t"], LANE_PAD, LANE_PAD).astype(jnp.bfloat16)
        b_pool = _pad_to(p["b_pool"], 1, LANE_PAD).astype(jnp.float32)
        # fc weight stacked for the single K=2*PAD matmul: rows [0:PAD) = self half,
        # rows [PAD:2*PAD) = aggregate half (matches cat([self, agg], dim=1)).
        w_fc = jnp.concatenate(
            [_pad_to(p["w_fc_t"][:d_in, :], LANE_PAD, LANE_PAD),
             _pad_to(p["w_fc_t"][d_in:, :], LANE_PAD, LANE_PAD)],
            axis=0).astype(jnp.bfloat16)                                     # (2*PAD, PAD)
        b_fc = _pad_to(p["b_fc"], 1, LANE_PAD).astype(jnp.float32)

        layer_args = [idx, w_pool, b_pool, w_fc, b_fc]
        if has_post:
            # fold the dropout 1/keep_p rescale into gamma/beta (dropout follows BN)
            gamma = _pad_to(p["gamma"] / keep_p, 1, LANE_PAD).astype(jnp.float32)
            beta = _pad_to(p["beta"] / keep_p, 1, LANE_PAD).astype(jnp.float32)
            dropout_rng, sub = jax.random.split(dropout_rng)
            mask = jax.random.bernoulli(sub, keep_p, (n_out_k, LANE_PAD)).astype(jnp.float32)
            layer_args += [gamma, beta, mask]
        inputs += layer_args

        n_rows_k = (num_samples + 1) * n_out_k
        total_flops += 2 * n_in_k * LANE_PAD * LANE_PAD            # aggregator fc1
        total_flops += 2 * n_rows_k * n_in_k * (2 * LANE_PAD)      # fused gather matmul
        total_flops += 2 * n_out_k * (2 * LANE_PAD) * LANE_PAD     # fc matmul
        if has_post:
            total_trans += LANE_PAD + 2 * n_out_k                  # BN rsqrt + L2 sqrt/recip

    n_last = self_indices[-1].shape[0]
    out_dim_last = params[-1]["b_fc"].shape[1]
    bytes_accessed = sum(int(a.size) * a.dtype.itemsize for a in inputs)
    bytes_accessed += n_last * LANE_PAD * 4

    kernel = functools.partial(_fused_graphsage_kernel,
                               layer_has_post=tuple(layer_has_post),
                               num_samples=num_samples)

    grid_spec = pltpu.PrefetchScalarGridSpec(
        num_scalar_prefetch=0,
        grid=(1,),
        in_specs=[pl.BlockSpec(a.shape, lambda i: (0, 0)) for a in inputs],   # all 2-D
        out_specs=pl.BlockSpec((n_last, LANE_PAD), lambda i: (0, 0)),
    )

    out_padded = pl.pallas_call(
        kernel,
        out_shape=jax.ShapeDtypeStruct((n_last, LANE_PAD), jnp.float32),
        grid_spec=grid_spec,
        compiler_params=pltpu.CompilerParams(
            dimension_semantics=("arbitrary",),
            vmem_limit_bytes=32 * 1024 * 1024,
        ),
        cost_estimate=pl.CostEstimate(
            flops=int(total_flops),
            transcendentals=int(total_trans),
            bytes_accessed=int(bytes_accessed),
        ),
    )(*inputs)

    return out_padded[:, :out_dim_last]


def _linear_params(key, in_dim, out_dim):
    k1, k2 = jax.random.split(key)
    bound = 1.0 / math.sqrt(in_dim)
    w_t = jax.random.uniform(k1, (in_dim, out_dim), jnp.float32, -bound, bound)  # W^T
    b = jax.random.uniform(k2, (1, out_dim), jnp.float32, -bound, bound)
    return w_t, b


if __name__ == "__main__":
    key = jax.random.PRNGKey(0)

    input_dim, hidden_dims, output_dim = 16, [32, 32], 16
    num_samples = 8
    dropout_p = 0.5
    layer_sizes = [64, 32, 16, 8]          # |node_layers[0..3]|, num_layers = 3
    dims = [input_dim] + hidden_dims       # aggregator / fc input dim per layer
    out_dims = hidden_dims + [output_dim]  # fc output dim per layer
    num_layers = len(out_dims)

    # input node features
    key, kf = jax.random.split(key)
    features = jax.random.normal(kf, (layer_sizes[0], input_dim), jnp.float32)

    # synthetic computation graph: node_layers[k+1] = first N_{k+1} nodes of layer k,
    # neighbors sampled uniformly among layer-k nodes
    self_indices, neigh_indices = [], []
    for k in range(num_layers):
        key, kn = jax.random.split(key)
        self_indices.append(jnp.arange(layer_sizes[k + 1], dtype=jnp.int32))
        neigh_indices.append(jax.random.randint(
            kn, (layer_sizes[k + 1], num_samples), 0, layer_sizes[k], dtype=jnp.int32))

    # deterministic parameters (shapes from __init__; MaxPoolAggregator => c = 2)
    params = []
    for k in range(num_layers):
        key, ka, kb = jax.random.split(key, 3)
        w_pool_t, b_pool = _linear_params(ka, dims[k], dims[k])        # aggregator fc1
        w_fc_t, b_fc = _linear_params(kb, 2 * dims[k], out_dims[k])    # GraphSage fc
        gamma = jnp.ones((1, out_dims[k]), jnp.float32)                # BatchNorm1d weight
        beta = jnp.zeros((1, out_dims[k]), jnp.float32)                # BatchNorm1d bias
        params.append(dict(w_pool_t=w_pool_t, b_pool=b_pool,
                           w_fc_t=w_fc_t, b_fc=b_fc, gamma=gamma, beta=beta))

    key, kd = jax.random.split(key)
    out = graphsage_forward(features, self_indices, neigh_indices, params,
                            dropout_rng=kd, num_samples=num_samples, dropout_p=dropout_p)
    out = jax.block_until_ready(out)
    assert out.shape == (layer_sizes[-1], output_dim)
    assert bool(jnp.all(jnp.isfinite(out)))
    print("KERNEL_OK")
</pallas_src>

<mosaic_0001>
module attributes {stable_mosaic.version = 11 : i64} {
  func.func @_fused_graphsage_kernel(%arg0: i32, %arg1: memref<64x128xf32, #tpu.memory_space<vmem>>, %arg2: memref<288x1xi32, #tpu.memory_space<vmem>>, %arg3: memref<128x128xbf16, #tpu.memory_space<vmem>>, %arg4: memref<1x128xf32, #tpu.memory_space<vmem>>, %arg5: memref<256x128xbf16, #tpu.memory_space<vmem>>, %arg6: memref<1x128xf32, #tpu.memory_space<vmem>>, %arg7: memref<1x128xf32, #tpu.memory_space<vmem>>, %arg8: memref<1x128xf32, #tpu.memory_space<vmem>>, %arg9: memref<32x128xf32, #tpu.memory_space<vmem>>, %arg10: memref<144x1xi32, #tpu.memory_space<vmem>>, %arg11: memref<128x128xbf16, #tpu.memory_space<vmem>>, %arg12: memref<1x128xf32, #tpu.memory_space<vmem>>, %arg13: memref<256x128xbf16, #tpu.memory_space<vmem>>, %arg14: memref<1x128xf32, #tpu.memory_space<vmem>>, %arg15: memref<1x128xf32, #tpu.memory_space<vmem>>, %arg16: memref<1x128xf32, #tpu.memory_space<vmem>>, %arg17: memref<16x128xf32, #tpu.memory_space<vmem>>, %arg18: memref<72x1xi32, #tpu.memory_space<vmem>>, %arg19: memref<128x128xbf16, #tpu.memory_space<vmem>>, %arg20: memref<1x128xf32, #tpu.memory_space<vmem>>, %arg21: memref<256x128xbf16, #tpu.memory_space<vmem>>, %arg22: memref<1x128xf32, #tpu.memory_space<vmem>>, %arg23: memref<8x128xf32, #tpu.memory_space<vmem>>) attributes {dimension_semantics = [#tpu.dimension_semantics<arbitrary>], iteration_bounds = array<i64: 1>, scalar_prefetch = 0 : i64, scratch_operands = 0 : i64, tpu.core_type = #tpu.core_type<tc>, window_params = [{pipeline_mode = #tpu.pipeline_mode<synchronous>, transform_indices = @transform_0, window_bounds = array<i64: 64, 128>}, {pipeline_mode = #tpu.pipeline_mode<synchronous>, transform_indices = @transform_1, window_bounds = array<i64: 288, 1>}, {pipeline_mode = #tpu.pipeline_mode<synchronous>, transform_indices = @transform_2, window_bounds = array<i64: 128, 128>}, {pipeline_mode = #tpu.pipeline_mode<synchronous>, transform_indices = @transform_3, window_bounds = array<i64: 1, 128>}, {pipeline_mode = #tpu.pipeline_mode<synchronous>, transform_indices = @transform_4, window_bounds = array<i64: 256, 128>}, {pipeline_mode = #tpu.pipeline_mode<synchronous>, transform_indices = @transform_5, window_bounds = array<i64: 1, 128>}, {pipeline_mode = #tpu.pipeline_mode<synchronous>, transform_indices = @transform_6, window_bounds = array<i64: 1, 128>}, {pipeline_mode = #tpu.pipeline_mode<synchronous>, transform_indices = @transform_7, window_bounds = array<i64: 1, 128>}, {pipeline_mode = #tpu.pipeline_mode<synchronous>, transform_indices = @transform_8, window_bounds = array<i64: 32, 128>}, {pipeline_mode = #tpu.pipeline_mode<synchronous>, transform_indices = @transform_9, window_bounds = array<i64: 144, 1>}, {pipeline_mode = #tpu.pipeline_mode<synchronous>, transform_indices = @transform_10, window_bounds = array<i64: 128, 128>}, {pipeline_mode = #tpu.pipeline_mode<synchronous>, transform_indices = @transform_11, window_bounds = array<i64: 1, 128>}, {pipeline_mode = #tpu.pipeline_mode<synchronous>, transform_indices = @transform_12, window_bounds = array<i64: 256, 128>}, {pipeline_mode = #tpu.pipeline_mode<synchronous>, transform_indices = @transform_13, window_bounds = array<i64: 1, 128>}, {pipeline_mode = #tpu.pipeline_mode<synchronous>, transform_indices = @transform_14, window_bounds = array<i64: 1, 128>}, {pipeline_mode = #tpu.pipeline_mode<synchronous>, transform_indices = @transform_15, window_bounds = array<i64: 1, 128>}, {pipeline_mode = #tpu.pipeline_mode<synchronous>, transform_indices = @transform_16, window_bounds = array<i64: 16, 128>}, {pipeline_mode = #tpu.pipeline_mode<synchronous>, transform_indices = @transform_17, window_bounds = array<i64: 72, 1>}, {pipeline_mode = #tpu.pipeline_mode<synchronous>, transform_indices = @transform_18, window_bounds = array<i64: 128, 128>}, {pipeline_mode = #tpu.pipeline_mode<synchronous>, transform_indices = @transform_19, window_bounds = array<i64: 1, 128>}, {pipeline_mode = #tpu.pipeline_mode<synchronous>, transform_indices = @transform_20, window_bounds = array<i64: 256, 128>}, {pipeline_mode = #tpu.pipeline_mode<synchronous>, transform_indices = @transform_21, window_bounds = array<i64: 1, 128>}, {pipeline_mode = #tpu.pipeline_mode<synchronous>, transform_indices = @transform_22, window_bounds = array<i64: 8, 128>}]} {
    %c0 = arith.constant 0 : index
    %c0_0 = arith.constant 0 : index
    %0 = vector.load %arg1[%c0, %c0_0] : memref<64x128xf32, #tpu.memory_space<vmem>>, vector<64x128xf32>
    %1 = arith.truncf %0 : vector<64x128xf32> to vector<64x128xbf16>
    %c0_1 = arith.constant 0 : index
    %c0_2 = arith.constant 0 : index
    %2 = vector.load %arg3[%c0_1, %c0_2] : memref<128x128xbf16, #tpu.memory_space<vmem>>, vector<128x128xbf16>
    %cst = arith.constant dense<0.000000e+00> : vector<64x128xf32>
    %3 = tpu.matmul %1, %2, %cst {dimension_numbers = #tpu.dot_dimension_numbers<[1], [0], [0], [1], [0, 0, 1, 1], [], []>} : vector<64x128xbf16>, vector<128x128xbf16>, vector<64x128xf32> -> vector<64x128xf32>
    %c0_3 = arith.constant 0 : index
    %c0_4 = arith.constant 0 : index
    %4 = vector.load %arg4[%c0_3, %c0_4] : memref<1x128xf32, #tpu.memory_space<vmem>>, vector<1x128xf32>
    %5 = vector.broadcast %4 : vector<1x128xf32> to vector<64x128xf32>
    %6 = arith.addf %3, %5 : vector<64x128xf32>
    %cst_5 = arith.constant 0.000000e+00 : f32
    %7 = vector.broadcast %cst_5 : f32 to vector<64x128xf32>
    %8 = arith.maximumf %6, %7 : vector<64x128xf32>
    %9 = arith.truncf %8 : vector<64x128xf32> to vector<64x128xbf16>
    %10 = tpu.iota {dimensions = array<i32: 1>} : vector<288x64xi32>
    %c0_6 = arith.constant 0 : index
    %c0_7 = arith.constant 0 : index
    %11 = vector.load %arg2[%c0_6, %c0_7] : memref<288x1xi32, #tpu.memory_space<vmem>>, vector<288x1xi32>
    %12 = vector.broadcast %11 : vector<288x1xi32> to vector<288x64xi32>
    %13 = arith.cmpi eq, %12, %10 : vector<288x64xi32>
    %14 = arith.extui %13 : vector<288x64xi1> to vector<288x64xi32>
    %15 = arith.sitofp %14 : vector<288x64xi32> to vector<288x64xf32>
    %16 = arith.truncf %15 : vector<288x64xf32> to vector<288x64xbf16>
    %17 = tpu.concatenate %1, %9 in 1 : vector<64x128xbf16>, vector<64x128xbf16> -> vector<64x256xbf16>
    %cst_8 = arith.constant dense<0.000000e+00> : vector<288x256xf32>
    %18 = tpu.matmul %16, %17, %cst_8 {dimension_numbers = #tpu.dot_dimension_numbers<[1], [0], [0], [1], [0, 0, 1, 1], [], []>} : vector<288x64xbf16>, vector<64x256xbf16>, vector<288x256xf32> -> vector<288x256xf32>
    %19 = vector.extract_strided_slice %18 {offsets = [0, 0], sizes = [32, 128], strides = [1, 1]} : vector<288x256xf32> to vector<32x128xf32>
    %20 = vector.extract_strided_slice %18 {offsets = [32, 128], sizes = [32, 128], strides = [1, 1]} : vector<288x256xf32> to vector<32x128xf32>
    %21 = vector.extract_strided_slice %18 {offsets = [64, 128], sizes = [32, 128], strides = [1, 1]} : vector<288x256xf32> to vector<32x128xf32>
    %22 = vector.extract_strided_slice %18 {offsets = [96, 128], sizes = [32, 128], strides = [1, 1]} : vector<288x256xf32> to vector<32x128xf32>
    %23 = vector.extract_strided_slice %18 {offsets = [128, 128], sizes = [32, 128], strides = [1, 1]} : vector<288x256xf32> to vector<32x128xf32>
    %24 = vector.extract_strided_slice %18 {offsets = [160, 128], sizes = [32, 128], strides = [1, 1]} : vector<288x256xf32> to vector<32x128xf32>
    %25 = vector.extract_strided_slice %18 {offsets = [192, 128], sizes = [32, 128], strides = [1, 1]} : vector<288x256xf32> to vector<32x128xf32>
    %26 = vector.extract_strided_slice %18 {offsets = [224, 128], sizes = [32, 128], strides = [1, 1]} : vector<288x256xf32> to vector<32x128xf32>
    %27 = vector.extract_strided_slice %18 {offsets = [256, 128], sizes = [32, 128], strides = [1, 1]} : vector<288x256xf32> to vector<32x128xf32>
    %28 = arith.maximumf %20, %21 : vector<32x128xf32>
    %29 = arith.maximumf %22, %23 : vector<32x128xf32>
    %30 = arith.maximumf %24, %25 : vector<32x128xf32>
    %31 = arith.maximumf %26, %27 : vector<32x128xf32>
    %32 = arith.maximumf %28, %29 : vector<32x128xf32>
    %33 = arith.maximumf %30, %31 : vector<32x128xf32>
    %34 = arith.maximumf %32, %33 : vector<32x128xf32>
    %35 = tpu.concatenate %19, %34 in 1 : vector<32x128xf32>, vector<32x128xf32> -> vector<32x256xf32>
    %36 = arith.truncf %35 : vector<32x256xf32> to vector<32x256xbf16>
    %c0_9 = arith.constant 0 : index
    %c0_10 = arith.constant 0 : index
    %37 = vector.load %arg5[%c0_9, %c0_10] : memref<256x128xbf16, #tpu.memory_space<vmem>>, vector<256x128xbf16>
    %cst_11 = arith.constant dense<0.000000e+00> : vector<32x128xf32>
    %38 = tpu.matmul %36, %37, %cst_11 {dimension_numbers = #tpu.dot_dimension_numbers<[1], [0], [0], [1], [0, 0, 1, 1], [], []>} : vector<32x256xbf16>, vector<256x128xbf16>, vector<32x128xf32> -> vector<32x128xf32>
    %c0_12 = arith.constant 0 : index
    %c0_13 = arith.constant 0 : index
    %39 = vector.load %arg6[%c0_12, %c0_13] : memref<1x128xf32, #tpu.memory_space<vmem>>, vector<1x128xf32>
    %40 = vector.broadcast %39 : vector<1x128xf32> to vector<32x128xf32>
    %41 = arith.addf %38, %40 : vector<32x128xf32>
    %cst_14 = arith.constant 0.000000e+00 : f32
    %42 = vector.broadcast %cst_14 : f32 to vector<32x128xf32>
    %43 = arith.maximumf %41, %42 : vector<32x128xf32>
    %cst_15 = arith.constant dense<0.000000e+00> : vector<128xf32>
    %44 = vector.multi_reduction <add>, %43, %cst_15 [0] : vector<32x128xf32> to vector<128xf32>
    %45 = vector.shape_cast %44 : vector<128xf32> to vector<1x128xf32>
    %cst_16 = arith.constant 3.200000e+01 : f32
    %46 = vector.broadcast %cst_16 : f32 to vector<1x128xf32>
    %47 = arith.divf %45, %46 : vector<1x128xf32>
    %48 = vector.broadcast %47 : vector<1x128xf32> to vector<32x128xf32>
    %49 = arith.subf %43, %48 : vector<32x128xf32>
    %50 = arith.mulf %49, %49 : vector<32x128xf32>
    %cst_17 = arith.constant dense<0.000000e+00> : vector<128xf32>
    %51 = vector.multi_reduction <add>, %50, %cst_17 [0] : vector<32x128xf32> to vector<128xf32>
    %52 = vector.shape_cast %51 : vector<128xf32> to vector<1x128xf32>
    %cst_18 = arith.constant 3.200000e+01 : f32
    %53 = vector.broadcast %cst_18 : f32 to vector<1x128xf32>
    %54 = arith.divf %52, %53 : vector<1x128xf32>
    %cst_19 = arith.constant 9.99999974E-6 : f32
    %55 = vector.broadcast %cst_19 : f32 to vector<1x128xf32>
    %56 = arith.addf %54, %55 : vector<1x128xf32>
    %57 = math.rsqrt %56 : vector<1x128xf32>
    %58 = vector.broadcast %57 : vector<1x128xf32> to vector<32x128xf32>
    %59 = arith.mulf %49, %58 : vector<32x128xf32>
    %c0_20 = arith.constant 0 : index
    %c0_21 = arith.constant 0 : index
    %60 = vector.load %arg7[%c0_20, %c0_21] : memref<1x128xf32, #tpu.memory_space<vmem>>, vector<1x128xf32>
    %61 = vector.broadcast %60 : vector<1x128xf32> to vector<32x128xf32>
    %62 = arith.mulf %59, %61 : vector<32x128xf32>
    %c0_22 = arith.constant 0 : index
    %c0_23 = arith.constant 0 : index
    %63 = vector.load %arg8[%c0_22, %c0_23] : memref<1x128xf32, #tpu.memory_space<vmem>>, vector<1x128xf32>
    %64 = vector.broadcast %63 : vector<1x128xf32> to vector<32x128xf32>
    %65 = arith.addf %62, %64 : vector<32x128xf32>
    %c0_24 = arith.constant 0 : index
    %c0_25 = arith.constant 0 : index
    %66 = vector.load %arg9[%c0_24, %c0_25] : memref<32x128xf32, #tpu.memory_space<vmem>>, vector<32x128xf32>
    %67 = arith.mulf %65, %66 : vector<32x128xf32>
    %68 = arith.mulf %67, %67 : vector<32x128xf32>
    %cst_26 = arith.constant dense<0.000000e+00> : vector<32xf32>
    %69 = vector.multi_reduction <add>, %68, %cst_26 [1] : vector<32x128xf32> to vector<32xf32>
    %70 = vector.shape_cast %69 : vector<32xf32> to vector<32x1xf32>
    %71 = math.sqrt %70 : vector<32x1xf32>
    %cst_27 = arith.constant 9.99999997E-7 : f32
    %72 = vector.broadcast %cst_27 : f32 to vector<32x1xf32>
    %73 = arith.addf %71, %72 : vector<32x1xf32>
    %cst_28 = arith.constant 1.000000e+00 : f32
    %74 = vector.broadcast %cst_28 : f32 to vector<32x1xf32>
    %75 = arith.divf %74, %73 : vector<32x1xf32>
    %76 = vector.broadcast %75 : vector<32x1xf32> to vector<32x128xf32>
    %77 = arith.mulf %67, %76 : vector<32x128xf32>
    %78 = arith.truncf %77 : vector<32x128xf32> to vector<32x128xbf16>
    %c0_29 = arith.constant 0 : index
    %c0_30 = arith.constant 0 : index
    %79 = vector.load %arg11[%c0_29, %c0_30] : memref<128x128xbf16, #tpu.memory_space<vmem>>, vector<128x128xbf16>
    %cst_31 = arith.constant dense<0.000000e+00> : vector<32x128xf32>
    %80 = tpu.matmul %78, %79, %cst_31 {dimension_numbers = #tpu.dot_dimension_numbers<[1], [0], [0], [1], [0, 0, 1, 1], [], []>} : vector<32x128xbf16>, vector<128x128xbf16>, vector<32x128xf32> -> vector<32x128xf32>
    %c0_32 = arith.constant 0 : index
    %c0_33 = arith.constant 0 : index
    %81 = vector.load %arg12[%c0_32, %c0_33] : memref<1x128xf32, #tpu.memory_space<vmem>>, vector<1x128xf32>
    %82 = vector.broadcast %81 : vector<1x128xf32> to vector<32x128xf32>
    %83 = arith.addf %80, %82 : vector<32x128xf32>
    %cst_34 = arith.constant 0.000000e+00 : f32
    %84 = vector.broadcast %cst_34 : f32 to vector<32x128xf32>
    %85 = arith.maximumf %83, %84 : vector<32x128xf32>
    %86 = arith.truncf %85 : vector<32x128xf32> to vector<32x128xbf16>
    %87 = tpu.iota {dimensions = array<i32: 1>} : vector<144x32xi32>
    %c0_35 = arith.constant 0 : index
    %c0_36 = arith.constant 0 : index
    %88 = vector.load %arg10[%c0_35, %c0_36] : memref<144x1xi32, #tpu.memory_space<vmem>>, vector<144x1xi32>
    %89 = vector.broadcast %88 : vector<144x1xi32> to vector<144x32xi32>
    %90 = arith.cmpi eq, %89, %87 : vector<144x32xi32>
    %91 = arith.extui %90 : vector<144x32xi1> to vector<144x32xi32>
    %92 = arith.sitofp %91 : vector<144x32xi32> to vector<144x32xf32>
    %93 = arith.truncf %92 : vector<144x32xf32> to vector<144x32xbf16>
    %94 = tpu.concatenate %78, %86 in 1 : vector<32x128xbf16>, vector<32x128xbf16> -> vector<32x256xbf16>
    %cst_37 = arith.constant dense<0.000000e+00> : vector<144x256xf32>
    %95 = tpu.matmul %93, %94, %cst_37 {dimension_numbers = #tpu.dot_dimension_numbers<[1], [0], [0], [1], [0, 0, 1, 1], [], []>} : vector<144x32xbf16>, vector<32x256xbf16>, vector<144x256xf32> -> vector<144x256xf32>
    %96 = vector.extract_strided_slice %95 {offsets = [0, 0], sizes = [16, 128], strides = [1, 1]} : vector<144x256xf32> to vector<16x128xf32>
    %97 = vector.extract_strided_slice %95 {offsets = [16, 128], sizes = [16, 128], strides = [1, 1]} : vector<144x256xf32> to vector<16x128xf32>
    %98 = vector.extract_strided_slice %95 {offsets = [32, 128], sizes = [16, 128], strides = [1, 1]} : vector<144x256xf32> to vector<16x128xf32>
    %99 = vector.extract_strided_slice %95 {offsets = [48, 128], sizes = [16, 128], strides = [1, 1]} : vector<144x256xf32> to vector<16x128xf32>
    %100 = vector.extract_strided_slice %95 {offsets = [64, 128], sizes = [16, 128], strides = [1, 1]} : vector<144x256xf32> to vector<16x128xf32>
    %101 = vector.extract_strided_slice %95 {offsets = [80, 128], sizes = [16, 128], strides = [1, 1]} : vector<144x256xf32> to vector<16x128xf32>
    %102 = vector.extract_strided_slice %95 {offsets = [96, 128], sizes = [16, 128], strides = [1, 1]} : vector<144x256xf32> to vector<16x128xf32>
    %103 = vector.extract_strided_slice %95 {offsets = [112, 128], sizes = [16, 128], strides = [1, 1]} : vector<144x256xf32> to vector<16x128xf32>
    %104 = vector.extract_strided_slice %95 {offsets = [128, 128], sizes = [16, 128], strides = [1, 1]} : vector<144x256xf32> to vector<16x128xf32>
    %105 = arith.maximumf %97, %98 : vector<16x128xf32>
    %106 = arith.maximumf %99, %100 : vector<16x128xf32>
    %107 = arith.maximumf %101, %102 : vector<16x128xf32>
    %108 = arith.maximumf %103, %104 : vector<16x128xf32>
    %109 = arith.maximumf %105, %106 : vector<16x128xf32>
    %110 = arith.maximumf %107, %108 : vector<16x128xf32>
    %111 = arith.maximumf %109, %110 : vector<16x128xf32>
    %112 = tpu.concatenate %96, %111 in 1 : vector<16x128xf32>, vector<16x128xf32> -> vector<16x256xf32>
    %113 = arith.truncf %112 : vector<16x256xf32> to vector<16x256xbf16>
    %c0_38 = arith.constant 0 : index
    %c0_39 = arith.constant 0 : index
    %114 = vector.load %arg13[%c0_38, %c0_39] : memref<256x128xbf16, #tpu.memory_space<vmem>>, vector<256x128xbf16>
    %cst_40 = arith.constant dense<0.000000e+00> : vector<16x128xf32>
    %115 = tpu.matmul %113, %114, %cst_40 {dimension_numbers = #tpu.dot_dimension_numbers<[1], [0], [0], [1], [0, 0, 1, 1], [], []>} : vector<16x256xbf16>, vector<256x128xbf16>, vector<16x128xf32> -> vector<16x128xf32>
    %c0_41 = arith.constant 0 : index
    %c0_42 = arith.constant 0 : index
    %116 = vector.load %arg14[%c0_41, %c0_42] : memref<1x128xf32, #tpu.memory_space<vmem>>, vector<1x128xf32>
    %117 = vector.broadcast %116 : vector<1x128xf32> to vector<16x128xf32>
    %118 = arith.addf %115, %117 : vector<16x128xf32>
    %cst_43 = arith.constant 0.000000e+00 : f32
    %119 = vector.broadcast %cst_43 : f32 to vector<16x128xf32>
    %120 = arith.maximumf %118, %119 : vector<16x128xf32>
    %cst_44 = arith.constant dense<0.000000e+00> : vector<128xf32>
    %121 = vector.multi_reduction <add>, %120, %cst_44 [0] : vector<16x128xf32> to vector<128xf32>
    %122 = vector.shape_cast %121 : vector<128xf32> to vector<1x128xf32>
    %cst_45 = arith.constant 1.600000e+01 : f32
    %123 = vector.broadcast %cst_45 : f32 to vector<1x128xf32>
    %124 = arith.divf %122, %123 : vector<1x128xf32>
    %125 = vector.broadcast %124 : vector<1x128xf32> to vector<16x128xf32>
    %126 = arith.subf %120, %125 : vector<16x128xf32>
    %127 = arith.mulf %126, %126 : vector<16x128xf32>
    %cst_46 = arith.constant dense<0.000000e+00> : vector<128xf32>
    %128 = vector.multi_reduction <add>, %127, %cst_46 [0] : vector<16x128xf32> to vector<128xf32>
    %129 = vector.shape_cast %128 : vector<128xf32> to vector<1x128xf32>
    %cst_47 = arith.constant 1.600000e+01 : f32
    %130 = vector.broadcast %cst_47 : f32 to vector<1x128xf32>
    %131 = arith.divf %129, %130 : vector<1x128xf32>
    %cst_48 = arith.constant 9.99999974E-6 : f32
    %132 = vector.broadcast %cst_48 : f32 to vector<1x128xf32>
    %133 = arith.addf %131, %132 : vector<1x128xf32>
    %134 = math.rsqrt %133 : vector<1x128xf32>
    %135 = vector.broadcast %134 : vector<1x128xf32> to vector<16x128xf32>
    %136 = arith.mulf %126, %135 : vector<16x128xf32>
    %c0_49 = arith.constant 0 : index
    %c0_50 = arith.constant 0 : index
    %137 = vector.load %arg15[%c0_49, %c0_50] : memref<1x128xf32, #tpu.memory_space<vmem>>, vector<1x128xf32>
    %138 = vector.broadcast %137 : vector<1x128xf32> to vector<16x128xf32>
    %139 = arith.mulf %136, %138 : vector<16x128xf32>
    %c0_51 = arith.constant 0 : index
    %c0_52 = arith.constant 0 : index
    %140 = vector.load %arg16[%c0_51, %c0_52] : memref<1x128xf32, #tpu.memory_space<vmem>>, vector<1x128xf32>
    %141 = vector.broadcast %140 : vector<1x128xf32> to vector<16x128xf32>
    %142 = arith.addf %139, %141 : vector<16x128xf32>
    %c0_53 = arith.constant 0 : index
    %c0_54 = arith.constant 0 : index
    %143 = vector.load %arg17[%c0_53, %c0_54] : memref<16x128xf32, #tpu.memory_space<vmem>>, vector<16x128xf32>
    %144 = arith.mulf %142, %143 : vector<16x128xf32>
    %145 = arith.mulf %144, %144 : vector<16x128xf32>
    %cst_55 = arith.constant dense<0.000000e+00> : vector<16xf32>
    %146 = vector.multi_reduction <add>, %145, %cst_55 [1] : vector<16x128xf32> to vector<16xf32>
    %147 = vector.shape_cast %146 : vector<16xf32> to vector<16x1xf32>
    %148 = math.sqrt %147 : vector<16x1xf32>
    %cst_56 = arith.constant 9.99999997E-7 : f32
    %149 = vector.broadcast %cst_56 : f32 to vector<16x1xf32>
    %150 = arith.addf %148, %149 : vector<16x1xf32>
    %cst_57 = arith.constant 1.000000e+00 : f32
    %151 = vector.broadcast %cst_57 : f32 to vector<16x1xf32>
    %152 = arith.divf %151, %150 : vector<16x1xf32>
    %153 = vector.broadcast %152 : vector<16x1xf32> to vector<16x128xf32>
    %154 = arith.mulf %144, %153 : vector<16x128xf32>
    %155 = arith.truncf %154 : vector<16x128xf32> to vector<16x128xbf16>
    %c0_58 = arith.constant 0 : index
    %c0_59 = arith.constant 0 : index
    %156 = vector.load %arg19[%c0_58, %c0_59] : memref<128x128xbf16, #tpu.memory_space<vmem>>, vector<128x128xbf16>
    %cst_60 = arith.constant dense<0.000000e+00> : vector<16x128xf32>
    %157 = tpu.matmul %155, %156, %cst_60 {dimension_numbers = #tpu.dot_dimension_numbers<[1], [0], [0], [1], [0, 0, 1, 1], [], []>} : vector<16x128xbf16>, vector<128x128xbf16>, vector<16x128xf32> -> vector<16x128xf32>
    %c0_61 = arith.constant 0 : index
    %c0_62 = arith.constant 0 : index
    %158 = vector.load %arg20[%c0_61, %c0_62] : memref<1x128xf32, #tpu.memory_space<vmem>>, vector<1x128xf32>
    %159 = vector.broadcast %158 : vector<1x128xf32> to vector<16x128xf32>
    %160 = arith.addf %157, %159 : vector<16x128xf32>
    %cst_63 = arith.constant 0.000000e+00 : f32
    %161 = vector.broadcast %cst_63 : f32 to vector<16x128xf32>
    %162 = arith.maximumf %160, %161 : vector<16x128xf32>
    %163 = arith.truncf %162 : vector<16x128xf32> to vector<16x128xbf16>
    %164 = tpu.iota {dimensions = array<i32: 1>} : vector<72x16xi32>
    %c0_64 = arith.constant 0 : index
    %c0_65 = arith.constant 0 : index
    %165 = vector.load %arg18[%c0_64, %c0_65] : memref<72x1xi32, #tpu.memory_space<vmem>>, vector<72x1xi32>
    %166 = vector.broadcast %165 : vector<72x1xi32> to vector<72x16xi32>
    %167 = arith.cmpi eq, %166, %164 : vector<72x16xi32>
    %168 = arith.extui %167 : vector<72x16xi1> to vector<72x16xi32>
    %169 = arith.sitofp %168 : vector<72x16xi32> to vector<72x16xf32>
    %170 = arith.truncf %169 : vector<72x16xf32> to vector<72x16xbf16>
    %171 = tpu.concatenate %155, %163 in 1 : vector<16x128xbf16>, vector<16x128xbf16> -> vector<16x256xbf16>
    %cst_66 = arith.constant dense<0.000000e+00> : vector<72x256xf32>
    %172 = tpu.matmul %170, %171, %cst_66 {dimension_numbers = #tpu.dot_dimension_numbers<[1], [0], [0], [1], [0, 0, 1, 1], [], []>} : vector<72x16xbf16>, vector<16x256xbf16>, vector<72x256xf32> -> vector<72x256xf32>
    %173 = vector.extract_strided_slice %172 {offsets = [0, 0], sizes = [8, 128], strides = [1, 1]} : vector<72x256xf32> to vector<8x128xf32>
    %174 = vector.extract_strided_slice %172 {offsets = [8, 128], sizes = [8, 128], strides = [1, 1]} : vector<72x256xf32> to vector<8x128xf32>
    %175 = vector.extract_strided_slice %172 {offsets = [16, 128], sizes = [8, 128], strides = [1, 1]} : vector<72x256xf32> to vector<8x128xf32>
    %176 = vector.extract_strided_slice %172 {offsets = [24, 128], sizes = [8, 128], strides = [1, 1]} : vector<72x256xf32> to vector<8x128xf32>
    %177 = vector.extract_strided_slice %172 {offsets = [32, 128], sizes = [8, 128], strides = [1, 1]} : vector<72x256xf32> to vector<8x128xf32>
    %178 = vector.extract_strided_slice %172 {offsets = [40, 128], sizes = [8, 128], strides = [1, 1]} : vector<72x256xf32> to vector<8x128xf32>
    %179 = vector.extract_strided_slice %172 {offsets = [48, 128], sizes = [8, 128], strides = [1, 1]} : vector<72x256xf32> to vector<8x128xf32>
    %180 = vector.extract_strided_slice %172 {offsets = [56, 128], sizes = [8, 128], strides = [1, 1]} : vector<72x256xf32> to vector<8x128xf32>
    %181 = vector.extract_strided_slice %172 {offsets = [64, 128], sizes = [8, 128], strides = [1, 1]} : vector<72x256xf32> to vector<8x128xf32>
    %182 = arith.maximumf %174, %175 : vector<8x128xf32>
    %183 = arith.maximumf %176, %177 : vector<8x128xf32>
    %184 = arith.maximumf %178, %179 : vector<8x128xf32>
    %185 = arith.maximumf %180, %181 : vector<8x128xf32>
    %186 = arith.maximumf %182, %183 : vector<8x128xf32>
    %187 = arith.maximumf %184, %185 : vector<8x128xf32>
    %188 = arith.maximumf %186, %187 : vector<8x128xf32>
    %189 = tpu.concatenate %173, %188 in 1 : vector<8x128xf32>, vector<8x128xf32> -> vector<8x256xf32>
    %190 = arith.truncf %189 : vector<8x256xf32> to vector<8x256xbf16>
    %c0_67 = arith.constant 0 : index
    %c0_68 = arith.constant 0 : index
    %191 = vector.load %arg21[%c0_67, %c0_68] : memref<256x128xbf16, #tpu.memory_space<vmem>>, vector<256x128xbf16>
    %cst_69 = arith.constant dense<0.000000e+00> : vector<8x128xf32>
    %192 = tpu.matmul %190, %191, %cst_69 {dimension_numbers = #tpu.dot_dimension_numbers<[1], [0], [0], [1], [0, 0, 1, 1], [], []>} : vector<8x256xbf16>, vector<256x128xbf16>, vector<8x128xf32> -> vector<8x128xf32>
    %c0_70 = arith.constant 0 : index
    %c0_71 = arith.constant 0 : index
    %193 = vector.load %arg22[%c0_70, %c0_71] : memref<1x128xf32, #tpu.memory_space<vmem>>, vector<1x128xf32>
    %194 = vector.broadcast %193 : vector<1x128xf32> to vector<8x128xf32>
    %195 = arith.addf %192, %194 : vector<8x128xf32>
    %c0_72 = arith.constant 0 : index
    %c0_73 = arith.constant 0 : index
    %196 = vector.load %arg23[%c0_72, %c0_73] : memref<8x128xf32, #tpu.memory_space<vmem>>, vector<8x128xf32>
    tpu.vector_store %arg23[%c0_72, %c0_73], %195 {strides = array<i32>} : memref<8x128xf32, #tpu.memory_space<vmem>>, vector<8x128xf32>,
    return
  }
  func.func @transform_0(%arg0: i32) -> (i32, i32) {
    %c0_i32 = arith.constant 0 : i32
    %c0_i32_0 = arith.constant 0 : i32
    %c0_i32_1 = arith.constant 0 : i32
    return %c0_i32, %c0_i32_0 : i32, i32
  }
  func.func @transform_1(%arg0: i32) -> (i32, i32) {
    %c0_i32 = arith.constant 0 : i32
    %c0_i32_0 = arith.constant 0 : i32
    %c0_i32_1 = arith.constant 0 : i32
    return %c0_i32, %c0_i32_0 : i32, i32
  }
  func.func @transform_2(%arg0: i32) -> (i32, i32) {
    %c0_i32 = arith.constant 0 : i32
    %c0_i32_0 = arith.constant 0 : i32
    %c0_i32_1 = arith.constant 0 : i32
    return %c0_i32, %c0_i32_0 : i32, i32
  }
  func.func @transform_3(%arg0: i32) -> (i32, i32) {
    %c0_i32 = arith.constant 0 : i32
    %c0_i32_0 = arith.constant 0 : i32
    %c0_i32_1 = arith.constant 0 : i32
    return %c0_i32, %c0_i32_0 : i32, i32
  }
  func.func @transform_4(%arg0: i32) -> (i32, i32) {
    %c0_i32 = arith.constant 0 : i32
    %c0_i32_0 = arith.constant 0 : i32
    %c0_i32_1 = arith.constant 0 : i32
    return %c0_i32, %c0_i32_0 : i32, i32
  }
  func.func @transform_5(%arg0: i32) -> (i32, i32) {
    %c0_i32 = arith.constant 0 : i32
    %c0_i32_0 = arith.constant 0 : i32
    %c0_i32_1 = arith.constant 0 : i32
    return %c0_i32, %c0_i32_0 : i32, i32
  }
  func.func @transform_6(%arg0: i32) -> (i32, i32) {
    %c0_i32 = arith.constant 0 : i32
    %c0_i32_0 = arith.constant 0 : i32
    %c0_i32_1 = arith.constant 0 : i32
    return %c0_i32, %c0_i32_0 : i32, i32
  }
  func.func @transform_7(%arg0: i32) -> (i32, i32) {
    %c0_i32 = arith.constant 0 : i32
    %c0_i32_0 = arith.constant 0 : i32
    %c0_i32_1 = arith.constant 0 : i32
    return %c0_i32, %c0_i32_0 : i32, i32
  }
  func.func @transform_8(%arg0: i32) -> (i32, i32) {
    %c0_i32 = arith.constant 0 : i32
    %c0_i32_0 = arith.constant 0 : i32
    %c0_i32_1 = arith.constant 0 : i32
    return %c0_i32, %c0_i32_0 : i32, i32
  }
  func.func @transform_9(%arg0: i32) -> (i32, i32) {
    %c0_i32 = arith.constant 0 : i32
    %c0_i32_0 = arith.constant 0 : i32
    %c0_i32_1 = arith.constant 0 : i32
    return %c0_i32, %c0_i32_0 : i32, i32
  }
  func.func @transform_10(%arg0: i32) -> (i32, i32) {
    %c0_i32 = arith.constant 0 : i32
    %c0_i32_0 = arith.constant 0 : i32
    %c0_i32_1 = arith.constant 0 : i32
    return %c0_i32, %c0_i32_0 : i32, i32
  }
  func.func @transform_11(%arg0: i32) -> (i32, i32) {
    %c0_i32 = arith.constant 0 : i32
    %c0_i32_0 = arith.constant 0 : i32
    %c0_i32_1 = arith.constant 0 : i32
    return %c0_i32, %c0_i32_0 : i32, i32
  }
  func.func @transform_12(%arg0: i32) -> (i32, i32) {
    %c0_i32 = arith.constant 0 : i32
    %c0_i32_0 = arith.constant 0 : i32
    %c0_i32_1 = arith.constant 0 : i32
    return %c0_i32, %c0_i32_0 : i32, i32
  }
  func.func @transform_13(%arg0: i32) -> (i32, i32) {
    %c0_i32 = arith.constant 0 : i32
    %c0_i32_0 = arith.constant 0 : i32
    %c0_i32_1 = arith.constant 0 : i32
    return %c0_i32, %c0_i32_0 : i32, i32
  }
  func.func @transform_14(%arg0: i32) -> (i32, i32) {
    %c0_i32 = arith.constant 0 : i32
    %c0_i32_0 = arith.constant 0 : i32
    %c0_i32_1 = arith.constant 0 : i32
    return %c0_i32, %c0_i32_0 : i32, i32
  }
  func.func @transform_15(%arg0: i32) -> (i32, i32) {
    %c0_i32 = arith.constant 0 : i32
    %c0_i32_0 = arith.constant 0 : i32
    %c0_i32_1 = arith.constant 0 : i32
    return %c0_i32, %c0_i32_0 : i32, i32
  }
  func.func @transform_16(%arg0: i32) -> (i32, i32) {
    %c0_i32 = arith.constant 0 : i32
    %c0_i32_0 = arith.constant 0 : i32
    %c0_i32_1 = arith.constant 0 : i32
    return %c0_i32, %c0_i32_0 : i32, i32
  }
  func.func @transform_17(%arg0: i32) -> (i32, i32) {
    %c0_i32 = arith.constant 0 : i32
    %c0_i32_0 = arith.constant 0 : i32
    %c0_i32_1 = arith.constant 0 : i32
    return %c0_i32, %c0_i32_0 : i32, i32
  }
  func.func @transform_18(%arg0: i32) -> (i32, i32) {
    %c0_i32 = arith.constant 0 : i32
    %c0_i32_0 = arith.constant 0 : i32
    %c0_i32_1 = arith.constant 0 : i32
    return %c0_i32, %c0_i32_0 : i32, i32
  }
  func.func @transform_19(%arg0: i32) -> (i32, i32) {
    %c0_i32 = arith.constant 0 : i32
    %c0_i32_0 = arith.constant 0 : i32
    %c0_i32_1 = arith.constant 0 : i32
    return %c0_i32, %c0_i32_0 : i32, i32
  }
  func.func @transform_20(%arg0: i32) -> (i32, i32) {
    %c0_i32 = arith.constant 0 : i32
    %c0_i32_0 = arith.constant 0 : i32
    %c0_i32_1 = arith.constant 0 : i32
    return %c0_i32, %c0_i32_0 : i32, i32
  }
  func.func @transform_21(%arg0: i32) -> (i32, i32) {
    %c0_i32 = arith.constant 0 : i32
    %c0_i32_0 = arith.constant 0 : i32
    %c0_i32_1 = arith.constant 0 : i32
    return %c0_i32, %c0_i32_0 : i32, i32
  }
  func.func @transform_22(%arg0: i32) -> (i32, i32) {
    %c0_i32 = arith.constant 0 : i32
    %c0_i32_0 = arith.constant 0 : i32
    %c0_i32_1 = arith.constant 0 : i32
    return %c0_i32, %c0_i32_0 : i32, i32
  }
}

</mosaic_0001>

<llo_original>
// kernel: tpu_custom_call.1
$region0: #{tpu_custom_call.1}
  #allocation0 [shape = 'u32[]', space=smem, size = 0x4, offset = 0x4, fixed_abs, tag = 'smem constant byte address 0x4 - core index']
  #allocation1 [shape = 'u32[72,128]{1,0:T(1,128)}', space=vmem, size = 0x9000, scoped, tag = 'internal scratch']
  %s0 = inlined_call_operand.vmem [shape: f32[64,128], index: 0, kind: input, shape index: {}]
  %s1 = inlined_call_operand.vmem [shape: s32[288,1], index: 1, kind: input, shape index: {}]
  %s2 = inlined_call_operand.hbm [shape: bf16[128,128], index: 2, kind: input, shape index: {}]
  %s3 = inlined_call_operand.hbm [shape: f32[1,128], index: 3, kind: input, shape index: {}]
  %s4 = inlined_call_operand.vmem [shape: bf16[256,128], index: 4, kind: input, shape index: {}]
  %s5 = inlined_call_operand.hbm [shape: f32[1,128], index: 5, kind: input, shape index: {}]
  %s6 = inlined_call_operand.hbm [shape: f32[1,128], index: 6, kind: input, shape index: {}]
  %s7 = inlined_call_operand.hbm [shape: f32[1,128], index: 7, kind: input, shape index: {}]
  %s8 = inlined_call_operand.hbm [shape: f32[32,128], index: 8, kind: input, shape index: {}]
  %s9 = inlined_call_operand.vmem [shape: s32[144,1], index: 9, kind: input, shape index: {}]
  %s10 = inlined_call_operand.vmem [shape: bf16[128,128], index: 10, kind: input, shape index: {}]
  %s11 = inlined_call_operand.hbm [shape: f32[1,128], index: 11, kind: input, shape index: {}]
  %s12 = inlined_call_operand.vmem [shape: bf16[256,128], index: 12, kind: input, shape index: {}]
  %s13 = inlined_call_operand.vmem [shape: f32[1,128], index: 13, kind: input, shape index: {}]
  %s14 = inlined_call_operand.vmem [shape: f32[1,128], index: 14, kind: input, shape index: {}]
  %s15 = inlined_call_operand.vmem [shape: f32[1,128], index: 15, kind: input, shape index: {}]
  %s16 = inlined_call_operand.hbm [shape: f32[16,128], index: 16, kind: input, shape index: {}]
  %s17 = inlined_call_operand.vmem [shape: s32[72,1], index: 17, kind: input, shape index: {}]
  %s18 = inlined_call_operand.hbm [shape: bf16[128,128], index: 18, kind: input, shape index: {}]
  %s19 = inlined_call_operand.vmem [shape: f32[1,128], index: 19, kind: input, shape index: {}]
  %s20 = inlined_call_operand.vmem [shape: bf16[256,128], index: 20, kind: input, shape index: {}]
  %s21 = inlined_call_operand.vmem [shape: f32[1,128], index: 21, kind: input, shape index: {}]
  %s22 = inlined_call_operand.hbm [shape: f32[8,128], index: 22, kind: output, shape index: {}]
  %s23 = sld [smem:[#allocation0]]
  $region134: #{tpu_custom_call.1} parent=0
    _
  %s25 = ssub.s32 1, %s23
  %s26 = scalar_select 0, %s25, %s23
  $region1: #{tpu_custom_call.1} parent=0
    #allocation2 [shape = 'u8[32768]{0}', space=vmem, size = 0x8000, scoped, tag = 'input window, operand 2, single buffered']
    #allocation3 [shape = 's32[1]{0}', space=sflag, size = 0x4, scoped, tag = 'scoped memory for tpu_custom_call.1']
    #allocation4 [shape = 's32[1]{0}', space=sflag, size = 0x4, scoped, tag = 'scoped memory for tpu_custom_call.1']
    #allocation5 [shape = 'u8[512]{0}', space=vmem, size = 0x400, scoped, tag = 'input window, operand 3, single buffered']
    #allocation6 [shape = 's32[1]{0}', space=sflag, size = 0x4, scoped, tag = 'scoped memory for tpu_custom_call.1']
    #allocation7 [shape = 'u8[512]{0}', space=vmem, size = 0x400, scoped, tag = 'input window, operand 5, single buffered']
    #allocation8 [shape = 'u8[512]{0}', space=vmem, size = 0x400, scoped, tag = 'input window, operand 6, single buffered']
    #allocation9 [shape = 's32[1]{0}', space=sflag, size = 0x4, scoped, tag = 'scoped memory for tpu_custom_call.1']
    #allocation10 [shape = 'u8[512]{0}', space=vmem, size = 0x400, scoped, tag = 'input window, operand 7, single buffered']
    #allocation11 [shape = 'u8[16384]{0}', space=vmem, size = 0x4000, scoped, tag = 'input window, operand 8, single buffered']
    #allocation12 [shape = 's32[1]{0}', space=sflag, size = 0x4, scoped, tag = 'scoped memory for tpu_custom_call.1']
    #allocation13 [shape = 'u8[512]{0}', space=vmem, size = 0x400, scoped, tag = 'input window, operand 11, single buffered']
    #allocation14 [shape = 'u8[8192]{0}', space=vmem, size = 0x2000, scoped, tag = 'input window, operand 16, single buffered']
    #allocation15 [shape = 's32[1]{0}', space=sflag, size = 0x4, scoped, tag = 'scoped memory for tpu_custom_call.1']
    #allocation16 [shape = 'u8[32768]{0}', space=vmem, size = 0x8000, scoped, tag = 'input window, operand 18, single buffered']
    #allocation17 [shape = 'u8[4096]{0}', space=vmem, size = 0x1000, scoped, tag = 'output window, operand 0, single buffered']
    %27 = vsyncpa [#allocation3], 0
    %28 = vsyncpa [#allocation6], 0
    %29 = vsyncpa [#allocation9], 0
    %30 = vsyncpa [#allocation12], 0
    %31 = vsyncpa [#allocation15], 0
    %32 = vsyncpa [#allocation4], 0
    // Predicated region
    $region2: #{tpu_custom_call.1} parent=1 // pred_check
      _
    $region3: #{tpu_custom_call.1} parent=1 // pred_check_branch
      %34 = sbr.rel (0) target = $region5
    $region4: #{tpu_custom_call.1} parent=1 // pred_region
      _
    $region5: #{tpu_custom_call.1} parent=1 // pred_fallthru
      _
    // Predicated region
    $region6: #{tpu_custom_call.1} parent=1 // pred_check
      _
    $region7: #{tpu_custom_call.1} parent=1 // pred_check_branch
      %36 = sbr.rel (0) target = $region9
    $region8: #{tpu_custom_call.1} parent=1 // pred_region
      _
    $region9: #{tpu_custom_call.1} parent=1 // pred_fallthru
      _
    // Predicated region
    $region10: #{tpu_custom_call.1} parent=1 // pred_check
      _
    $region11: #{tpu_custom_call.1} parent=1 // pred_check_branch
      %38 = sbr.rel (0) target = $region13
    $region12: #{tpu_custom_call.1} parent=1 // pred_region
      %40 = vsyncadd [#allocation3], 0
      %s41 = sshll.u32 %s2, 4
      %s42 = int_to_ptr.hbm [resolvable:$true] %s41
      %s43 = sshll.u32 [#allocation2], 4
      %s44 = int_to_ptr.vmem [resolvable:$true] %s43
      %49 = dma.hbm_to_vmem [thread:$0]  %s42, 1024, %s44, [#allocation3], 64, 64, 4
    $region13: #{tpu_custom_call.1} parent=1 // pred_fallthru
      _
    // Predicated region
    $region14: #{tpu_custom_call.1} parent=1 // pred_check
      _
    $region15: #{tpu_custom_call.1} parent=1 // pred_check_branch
      %51 = sbr.rel (0) target = $region17
    $region16: #{tpu_custom_call.1} parent=1 // pred_region
      %53 = vsyncadd [#allocation6], 0
      %s55 = sshll.u32 %s3, 4
      %s56 = int_to_ptr.hbm [resolvable:$true] %s55
      %s57 = sshll.u32 [#allocation5], 4
      %s58 = int_to_ptr.vmem [resolvable:$true] %s57
      %60 = dma.hbm_to_vmem [thread:$0]  %s56, 16, %s58, [#allocation6]
    $region17: #{tpu_custom_call.1} parent=1 // pred_fallthru
      _
    // Predicated region
    $region18: #{tpu_custom_call.1} parent=1 // pred_check
      _
    $region19: #{tpu_custom_call.1} parent=1 // pred_check_branch
      %62 = sbr.rel (0) target = $region21
    $region20: #{tpu_custom_call.1} parent=1 // pred_region
      _
    $region21: #{tpu_custom_call.1} parent=1 // pred_fallthru
      _
    // Predicated region
    $region22: #{tpu_custom_call.1} parent=1 // pred_check
      _
    $region23: #{tpu_custom_call.1} parent=1 // pred_check_branch
      %64 = sbr.rel (0) target = $region25
    $region24: #{tpu_custom_call.1} parent=1 // pred_region
      %66 = vsyncadd [#allocation6], 0
      %s68 = sshll.u32 %s5, 4
      %s69 = int_to_ptr.hbm [resolvable:$true] %s68
      %s70 = sshll.u32 [#allocation7], 4
      %s71 = int_to_ptr.vmem [resolvable:$true] %s70
      %73 = dma.hbm_to_vmem [thread:$0]  %s69, 16, %s71, [#allocation6]
    $region25: #{tpu_custom_call.1} parent=1 // pred_fallthru
      _
    // Predicated region
    $region26: #{tpu_custom_call.1} parent=1 // pred_check
      _
    $region27: #{tpu_custom_call.1} parent=1 // pred_check_branch
      %75 = sbr.rel (0) target = $region29
    $region28: #{tpu_custom_call.1} parent=1 // pred_region
      %77 = vsyncadd [#allocation9], 0
      %s79 = sshll.u32 %s6, 4
      %s80 = int_to_ptr.hbm [resolvable:$true] %s79
      %s81 = sshll.u32 [#allocation8], 4
      %s82 = int_to_ptr.vmem [resolvable:$true] %s81
      %84 = dma.hbm_to_vmem [thread:$0]  %s80, 16, %s82, [#allocation9]
    $region29: #{tpu_custom_call.1} parent=1 // pred_fallthru
      _
    // Predicated region
    $region30: #{tpu_custom_call.1} parent=1 // pred_check
      _
    $region31: #{tpu_custom_call.1} parent=1 // pred_check_branch
      %86 = sbr.rel (0) target = $region33
    $region32: #{tpu_custom_call.1} parent=1 // pred_region
      %88 = vsyncadd [#allocation9], 0
      %s90 = sshll.u32 %s7, 4
      %s91 = int_to_ptr.hbm [resolvable:$true] %s90
      %s92 = sshll.u32 [#allocation10], 4
      %s93 = int_to_ptr.vmem [resolvable:$true] %s92
      %95 = dma.hbm_to_vmem [thread:$0]  %s91, 16, %s93, [#allocation9]
    $region33: #{tpu_custom_call.1} parent=1 // pred_fallthru
      _
    // Predicated region
    $region34: #{tpu_custom_call.1} parent=1 // pred_check
      _
    $region35: #{tpu_custom_call.1} parent=1 // pred_check_branch
      %97 = sbr.rel (0) target = $region37
    $region36: #{tpu_custom_call.1} parent=1 // pred_region
      %99 = vsyncadd [#allocation12], 0
      %s100 = sshll.u32 %s8, 4
      %s101 = int_to_ptr.hbm [resolvable:$true] %s100
      %s102 = sshll.u32 [#allocation11], 4
      %s103 = int_to_ptr.vmem [resolvable:$true] %s102
      %108 = dma.hbm_to_vmem [thread:$0]  %s101, 512, %s103, [#allocation12], 128, 128, 8
    $region37: #{tpu_custom_call.1} parent=1 // pred_fallthru
      _
    // Predicated region
    $region38: #{tpu_custom_call.1} parent=1 // pred_check
      _
    $region39: #{tpu_custom_call.1} parent=1 // pred_check_branch
      %110 = sbr.rel (0) target = $region41
    $region40: #{tpu_custom_call.1} parent=1 // pred_region
      _
    $region41: #{tpu_custom_call.1} parent=1 // pred_fallthru
      _
    // Predicated region
    $region42: #{tpu_custom_call.1} parent=1 // pred_check
      _
    $region43: #{tpu_custom_call.1} parent=1 // pred_check_branch
      %112 = sbr.rel (0) target = $region45
    $region44: #{tpu_custom_call.1} parent=1 // pred_region
      _
    $region45: #{tpu_custom_call.1} parent=1 // pred_fallthru
      _
    // Predicated region
    $region46: #{tpu_custom_call.1} parent=1 // pred_check
      _
    $region47: #{tpu_custom_call.1} parent=1 // pred_check_branch
      %114 = sbr.rel (0) target = $region49
    $region48: #{tpu_custom_call.1} parent=1 // pred_region
      %116 = vsyncadd [#allocation12], 0
      %s118 = sshll.u32 %s11, 4
      %s119 = int_to_ptr.hbm [resolvable:$true] %s118
      %s120 = sshll.u32 [#allocation13], 4
      %s121 = int_to_ptr.vmem [resolvable:$true] %s120
      %123 = dma.hbm_to_vmem [thread:$0]  %s119, 16, %s121, [#allocation12]
    $region49: #{tpu_custom_call.1} parent=1 // pred_fallthru
      _
    // Predicated region
    $region50: #{tpu_custom_call.1} parent=1 // pred_check
      _
    $region51: #{tpu_custom_call.1} parent=1 // pred_check_branch
      %125 = sbr.rel (0) target = $region53
    $region52: #{tpu_custom_call.1} parent=1 // pred_region
      _
    $region53: #{tpu_custom_call.1} parent=1 // pred_fallthru
      _
    // Predicated region
    $region54: #{tpu_custom_call.1} parent=1 // pred_check
      _
    $region55: #{tpu_custom_call.1} parent=1 // pred_check_branch
      %127 = sbr.rel (0) target = $region57
    $region56: #{tpu_custom_call.1} parent=1 // pred_region
      _
    $region57: #{tpu_custom_call.1} parent=1 // pred_fallthru
      _
    // Predicated region
    $region58: #{tpu_custom_call.1} parent=1 // pred_check
      _
    $region59: #{tpu_custom_call.1} parent=1 // pred_check_branch
      %129 = sbr.rel (0) target = $region61
    $region60: #{tpu_custom_call.1} parent=1 // pred_region
      _
    $region61: #{tpu_custom_call.1} parent=1 // pred_fallthru
      _
    // Predicated region
    $region62: #{tpu_custom_call.1} parent=1 // pred_check
      _
    $region63: #{tpu_custom_call.1} parent=1 // pred_check_branch
      %131 = sbr.rel (0) target = $region65
    $region64: #{tpu_custom_call.1} parent=1 // pred_region
      _
    $region65: #{tpu_custom_call.1} parent=1 // pred_fallthru
      _
    // Predicated region
    $region66: #{tpu_custom_call.1} parent=1 // pred_check
      _
    $region67: #{tpu_custom_call.1} parent=1 // pred_check_branch
      %133 = sbr.rel (0) target = $region69
    $region68: #{tpu_custom_call.1} parent=1 // pred_region
      %135 = vsyncadd [#allocation15], 0
      %s136 = sshll.u32 %s16, 4
      %s137 = int_to_ptr.hbm [resolvable:$true] %s136
      %s138 = sshll.u32 [#allocation14], 4
      %s139 = int_to_ptr.vmem [resolvable:$true] %s138
      %144 = dma.hbm_to_vmem [thread:$0]  %s137, 256, %s139, [#allocation15], 128, 128, 8
    $region69: #{tpu_custom_call.1} parent=1 // pred_fallthru
      _
    // Predicated region
    $region70: #{tpu_custom_call.1} parent=1 // pred_check
      _
    $region71: #{tpu_custom_call.1} parent=1 // pred_check_branch
      %146 = sbr.rel (0) target = $region73
    $region72: #{tpu_custom_call.1} parent=1 // pred_region
      _
    $region73: #{tpu_custom_call.1} parent=1 // pred_fallthru
      _
    // Predicated region
    $region74: #{tpu_custom_call.1} parent=1 // pred_check
      _
    $region75: #{tpu_custom_call.1} parent=1 // pred_check_branch
      %148 = sbr.rel (0) target = $region77
    $region76: #{tpu_custom_call.1} parent=1 // pred_region
      %150 = vsyncadd [#allocation15], 0
      %s151 = sshll.u32 %s18, 4
      %s152 = int_to_ptr.hbm [resolvable:$true] %s151
      %s153 = sshll.u32 [#allocation16], 4
      %s154 = int_to_ptr.vmem [resolvable:$true] %s153
      %159 = dma.hbm_to_vmem [thread:$0]  %s152, 1024, %s154, [#allocation15], 64, 64, 4
    $region77: #{tpu_custom_call.1} parent=1 // pred_fallthru
      _
    // Predicated region
    $region78: #{tpu_custom_call.1} parent=1 // pred_check
      _
    $region79: #{tpu_custom_call.1} parent=1 // pred_check_branch
      %161 = sbr.rel (0) target = $region81
    $region80: #{tpu_custom_call.1} parent=1 // pred_region
      _
    $region81: #{tpu_custom_call.1} parent=1 // pred_fallthru
      _
    // Predicated region
    $region82: #{tpu_custom_call.1} parent=1 // pred_check
      _
    $region83: #{tpu_custom_call.1} parent=1 // pred_check_branch
      %163 = sbr.rel (0) target = $region85
    $region84: #{tpu_custom_call.1} parent=1 // pred_region
      _
    $region85: #{tpu_custom_call.1} parent=1 // pred_fallthru
      _
    // Predicated region
    $region86: #{tpu_custom_call.1} parent=1 // pred_check
      _
    $region87: #{tpu_custom_call.1} parent=1 // pred_check_branch
      %165 = sbr.rel (0) target = $region89
    $region88: #{tpu_custom_call.1} parent=1 // pred_region
      _
    $region89: #{tpu_custom_call.1} parent=1 // pred_fallthru
      _
    // Predicated region
    $region90: #{tpu_custom_call.1} parent=1 // pred_check
      _
    $region91: #{tpu_custom_call.1} parent=1 // pred_check_branch
      %167 = sbr.rel (0) target = $region93
    $region92: #{tpu_custom_call.1} parent=1 // pred_region
      %169 = dma.done [#allocation3], 1024
    $region93: #{tpu_custom_call.1} parent=1 // pred_fallthru
      _
    // Predicated region
    $region94: #{tpu_custom_call.1} parent=1 // pred_check
      _
    $region95: #{tpu_custom_call.1} parent=1 // pred_check_branch
      %171 = sbr.rel (0) target = $region97
    $region96: #{tpu_custom_call.1} parent=1 // pred_region
      %173 = dma.done [#allocation6], 16
    $region97: #{tpu_custom_call.1} parent=1 // pred_fallthru
      _
    // Predicated region
    $region98: #{tpu_custom_call.1} parent=1 // pred_check
      _
    $region99: #{tpu_custom_call.1} parent=1 // pred_check_branch
      %175 = sbr.rel (0) target = $region101
    $region100: #{tpu_custom_call.1} parent=1 // pred_region
      %177 = dma.done [#allocation6], 16
    $region101: #{tpu_custom_call.1} parent=1 // pred_fallthru
      _
    // Predicated region
    $region102: #{tpu_custom_call.1} parent=1 // pred_check
      _
    $region103: #{tpu_custom_call.1} parent=1 // pred_check_branch
      %179 = sbr.rel (0) target = $region105
    $region104: #{tpu_custom_call.1} parent=1 // pred_region
      %181 = dma.done [#allocation9], 16
    $region105: #{tpu_custom_call.1} parent=1 // pred_fallthru
      _
    // Predicated region
    $region106: #{tpu_custom_call.1} parent=1 // pred_check
      _
    $region107: #{tpu_custom_call.1} parent=1 // pred_check_branch
      %183 = sbr.rel (0) target = $region109
    $region108: #{tpu_custom_call.1} parent=1 // pred_region
      %185 = dma.done [#allocation9], 16
    $region109: #{tpu_custom_call.1} parent=1 // pred_fallthru
      _
    // Predicated region
    $region110: #{tpu_custom_call.1} parent=1 // pred_check
      _
    $region111: #{tpu_custom_call.1} parent=1 // pred_check_branch
      %187 = sbr.rel (0) target = $region113
    $region112: #{tpu_custom_call.1} parent=1 // pred_region
      %189 = dma.done [#allocation12], 512
    $region113: #{tpu_custom_call.1} parent=1 // pred_fallthru
      _
    // Predicated region
    $region114: #{tpu_custom_call.1} parent=1 // pred_check
      _
    $region115: #{tpu_custom_call.1} parent=1 // pred_check_branch
      %191 = sbr.rel (0) target = $region117
    $region116: #{tpu_custom_call.1} parent=1 // pred_region
      %193 = dma.done [#allocation12], 16
    $region117: #{tpu_custom_call.1} parent=1 // pred_fallthru
      _
    // Predicated region
    $region118: #{tpu_custom_call.1} parent=1 // pred_check
      _
    $region119: #{tpu_custom_call.1} parent=1 // pred_check_branch
      %195 = sbr.rel (0) target = $region121
    $region120: #{tpu_custom_call.1} parent=1 // pred_region
      %197 = dma.done [#allocation15], 256
    $region121: #{tpu_custom_call.1} parent=1 // pred_fallthru
      _
    // Predicated region
    $region122: #{tpu_custom_call.1} parent=1 // pred_check
      _
    $region123: #{tpu_custom_call.1} parent=1 // pred_check_branch
      %199 = sbr.rel (0) target = $region125
    $region124: #{tpu_custom_call.1} parent=1 // pred_region
      %201 = dma.done [#allocation15], 1024
    $region125: #{tpu_custom_call.1} parent=1 // pred_fallthru
      _
    %v203 = vld [vmem:[%s0] sm:$0xff]
    %v204 = vld [vmem:[%s0 + $0x8] sm:$0xff]
    %v205 = vld [vmem:[%s0 + $0x10] sm:$0xff]
    %v206 = vld [vmem:[%s0 + $0x18] sm:$0xff]
    %v207 = vld [vmem:[%s0 + $0x20] sm:$0xff]
    %v208 = vld [vmem:[%s0 + $0x28] sm:$0xff]
    %v209 = vld [vmem:[%s0 + $0x30] sm:$0xff]
    %v210 = vld [vmem:[%s0 + $0x38] sm:$0xff]
    %v211 = vpack.c.bf16 %v203, %v203
    %v212 = vpack.c.bf16 %v204, %v204
    %v213 = vpack.c.bf16 %v205, %v205
    %v214 = vpack.c.bf16 %v206, %v206
    %v215 = vpack.c.bf16 %v207, %v207
    %v216 = vpack.c.bf16 %v208, %v208
    %v217 = vpack.c.bf16 %v209, %v209
    %v218 = vpack.c.bf16 %v210, %v210
    %v219 = vld [vmem:[#allocation2] sm:$0xf]
    %v220 = vld [vmem:[#allocation2 + $0x4] sm:$0xf]
    %v221 = vld [vmem:[#allocation2 + $0x8] sm:$0xf]
    %v222 = vld [vmem:[#allocation2 + $0xc] sm:$0xf]
    %v223 = vld [vmem:[#allocation2 + $0x10] sm:$0xf]
    %v224 = vld [vmem:[#allocation2 + $0x14] sm:$0xf]
    %v225 = vld [vmem:[#allocation2 + $0x18] sm:$0xf]
    %v226 = vld [vmem:[#allocation2 + $0x1c] sm:$0xf]
    %v227 = vld [vmem:[#allocation2 + $0x20] sm:$0xf]
    %v228 = vld [vmem:[#allocation2 + $0x24] sm:$0xf]
    %v229 = vld [vmem:[#allocation2 + $0x28] sm:$0xf]
    %v230 = vld [vmem:[#allocation2 + $0x2c] sm:$0xf]
    %v231 = vld [vmem:[#allocation2 + $0x30] sm:$0xf]
    %v232 = vld [vmem:[#allocation2 + $0x34] sm:$0xf]
    %v233 = vld [vmem:[#allocation2 + $0x38] sm:$0xf]
    %v234 = vld [vmem:[#allocation2 + $0x3c] sm:$0xf]
    %v235 = vld [vmem:[#allocation5] sm:$0x1]
    %v237 = vperm.slane %v235, 0
    %v247 = vunpack.c.l.b16 %v211
    %v248 = vunpack.c.l.b16 %v212
    %v249 = vunpack.c.l.b16 %v213
    %v250 = vunpack.c.l.b16 %v214
    %v251 = vunpack.c.l.b16 %v215
    %v252 = vunpack.c.l.b16 %v216
    %v253 = vunpack.c.l.b16 %v217
    %v254 = vunpack.c.l.b16 %v218
    %v255 = vpack.c.b16 %v248, %v247
    %v256 = vpack.c.b16 %v250, %v249
    %v257 = vpack.c.b16 %v252, %v251
    %v258 = vpack.c.b16 %v254, %v253
    %v279 = vunpack.c.l.b16 %v219
    %v280 = vunpack.c.l.b16 %v220
    %v281 = vunpack.c.l.b16 %v221
    %v282 = vunpack.c.l.b16 %v222
    %v283 = vunpack.c.l.b16 %v223
    %v284 = vunpack.c.l.b16 %v224
    %v285 = vunpack.c.l.b16 %v225
    %v286 = vunpack.c.l.b16 %v226
    %v287 = vunpack.c.l.b16 %v227
    %v288 = vunpack.c.l.b16 %v228
    %v289 = vunpack.c.l.b16 %v229
    %v290 = vunpack.c.l.b16 %v230
    %v291 = vunpack.c.l.b16 %v231
    %v292 = vunpack.c.l.b16 %v232
    %v293 = vunpack.c.l.b16 %v233
    %v294 = vunpack.c.l.b16 %v234
    %v295 = vpack.c.b16 %v280, %v279
    %v296 = vpack.c.b16 %v282, %v281
    %v297 = vpack.c.b16 %v284, %v283
    %v298 = vpack.c.b16 %v286, %v285
    %v299 = vpack.c.b16 %v288, %v287
    %v300 = vpack.c.b16 %v290, %v289
    %v301 = vpack.c.b16 %v292, %v291
    %v302 = vpack.c.b16 %v294, %v293
    %311 = vmatpush.bf16.msra.mxu0 %v302
    %312 = vmatpush.bf16.msra.mxu0 %v301
    %313 = vmatpush.bf16.msra.mxu0 %v300
    %314 = vmatpush.bf16.msra.mxu0 %v299
    %315 = vmatpush.bf16.msra.mxu0 %v298
    %316 = vmatpush.bf16.msra.mxu0 %v297
    %317 = vmatpush.bf16.msra.mxu0 %v296
    %318 = vmatpush.bf16.msra.mxu0 %v295
    %319 = vmatmul.bf16.gmra.mxu0 %v255
    %v320 = vpop.f32.mrf.mxu0
    %v321 = vadd.f32 %v237, %v320
    %v322 = vpop.f32.mrf.mxu0
    %v323 = vadd.f32 %v237, %v322
    %324 = vmatmul.bf16.gmra.mxu0 %v256
    %v325 = vpop.f32.mrf.mxu0
    %v326 = vadd.f32 %v237, %v325
    %v327 = vpop.f32.mrf.mxu0
    %v328 = vadd.f32 %v237, %v327
    %329 = vmatmul.bf16.gmra.mxu0 %v257
    %v330 = vpop.f32.mrf.mxu0
    %v331 = vadd.f32 %v237, %v330
    %v332 = vpop.f32.mrf.mxu0
    %v333 = vadd.f32 %v237, %v332
    %334 = vmatmul.bf16.gmra.mxu0 %v258
    %v335 = vpop.f32.mrf.mxu0
    %v336 = vadd.f32 %v237, %v335
    %v337 = vpop.f32.mrf.mxu0
    %v338 = vadd.f32 %v237, %v337
    %339 = vdwg.mxu0
    %v340 = vmax.f32 %v321, 0.0
    %v341 = vmax.f32 %v323, 0.0
    %v342 = vmax.f32 %v326, 0.0
    %v343 = vmax.f32 %v328, 0.0
    %v344 = vmax.f32 %v331, 0.0
    %v345 = vmax.f32 %v333, 0.0
    %v346 = vmax.f32 %v336, 0.0
    %v347 = vmax.f32 %v338, 0.0
    %v348 = vpack.c.bf16 %v340, %v340
    %v349 = vpack.c.bf16 %v341, %v341
    %v350 = vpack.c.bf16 %v342, %v342
    %v351 = vpack.c.bf16 %v343, %v343
    %v352 = vpack.c.bf16 %v344, %v344
    %v353 = vpack.c.bf16 %v345, %v345
    %v354 = vpack.c.bf16 %v346, %v346
    %v355 = vpack.c.bf16 %v347, %v347
    %v356 = vlaneseq
    %v357 = vand.u32 %v356, 127
    %v358 = vld [vmem:[%s1] sm:$0xff]
    %v359 = vld [vmem:[%s1 + $0x8] sm:$0xff]
    %v360 = vld [vmem:[%s1 + $0x10] sm:$0xff]
    %v361 = vld [vmem:[%s1 + $0x18] sm:$0xff]
    %v362 = vld [vmem:[%s1 + $0x20] sm:$0xff]
    %v363 = vld [vmem:[%s1 + $0x28] sm:$0xff]
    %v364 = vld [vmem:[%s1 + $0x30] sm:$0xff]
    %v365 = vld [vmem:[%s1 + $0x38] sm:$0xff]
    %v366 = vld [vmem:[%s1 + $0x40] sm:$0xff]
    %v367 = vld [vmem:[%s1 + $0x48] sm:$0xff]
    %v368 = vld [vmem:[%s1 + $0x50] sm:$0xff]
    %v369 = vld [vmem:[%s1 + $0x58] sm:$0xff]
    %v370 = vld [vmem:[%s1 + $0x60] sm:$0xff]
    %v371 = vld [vmem:[%s1 + $0x68] sm:$0xff]
    %v372 = vld [vmem:[%s1 + $0x70] sm:$0xff]
    %v373 = vld [vmem:[%s1 + $0x78] sm:$0xff]
    %v374 = vld [vmem:[%s1 + $0x80] sm:$0xff]
    %v375 = vld [vmem:[%s1 + $0x88] sm:$0xff]
    %v376 = vld [vmem:[%s1 + $0x90] sm:$0xff]
    %v377 = vld [vmem:[%s1 + $0x98] sm:$0xff]
    %v378 = vld [vmem:[%s1 + $0xa0] sm:$0xff]
    %v379 = vld [vmem:[%s1 + $0xa8] sm:$0xff]
    %v380 = vld [vmem:[%s1 + $0xb0] sm:$0xff]
    %v381 = vld [vmem:[%s1 + $0xb8] sm:$0xff]
    %v382 = vld [vmem:[%s1 + $0xc0] sm:$0xff]
    %v383 = vld [vmem:[%s1 + $0xc8] sm:$0xff]
    %v384 = vld [vmem:[%s1 + $0xd0] sm:$0xff]
    %v385 = vld [vmem:[%s1 + $0xd8] sm:$0xff]
    %v386 = vld [vmem:[%s1 + $0xe0] sm:$0xff]
    %v387 = vld [vmem:[%s1 + $0xe8] sm:$0xff]
    %v388 = vld [vmem:[%s1 + $0xf0] sm:$0xff]
    %v389 = vld [vmem:[%s1 + $0xf8] sm:$0xff]
    %v390 = vld [vmem:[%s1 + $0x100] sm:$0xff]
    %v391 = vld [vmem:[%s1 + $0x108] sm:$0xff]
    %v392 = vld [vmem:[%s1 + $0x110] sm:$0xff]
    %v393 = vld [vmem:[%s1 + $0x118] sm:$0xff]
    %394 = vset.pattern.permute.xlu0 0
    %395 = vperm.xlu0 %394, %v358
    %v396 = vpop.permute.xlu0 %395
    %397 = vset.pattern.permute.xlu0 0
    %398 = vperm.xlu0 %397, %v359
    %v399 = vpop.permute.xlu0 %398
    %400 = vset.pattern.permute.xlu0 0
    %401 = vperm.xlu0 %400, %v360
    %v402 = vpop.permute.xlu0 %401
    %403 = vset.pattern.permute.xlu0 0
    %404 = vperm.xlu0 %403, %v361
    %v405 = vpop.permute.xlu0 %404
    %406 = vset.pattern.permute.xlu0 0
    %407 = vperm.xlu0 %406, %v362
    %v408 = vpop.permute.xlu0 %407
    %409 = vset.pattern.permute.xlu0 0
    %410 = vperm.xlu0 %409, %v363
    %v411 = vpop.permute.xlu0 %410
    %412 = vset.pattern.permute.xlu0 0
    %413 = vperm.xlu0 %412, %v364
    %v414 = vpop.permute.xlu0 %413
    %415 = vset.pattern.permute.xlu0 0
    %416 = vperm.xlu0 %415, %v365
    %v417 = vpop.permute.xlu0 %416
    %418 = vset.pattern.permute.xlu0 0
    %419 = vperm.xlu0 %418, %v366
    %v420 = vpop.permute.xlu0 %419
    %421 = vset.pattern.permute.xlu0 0
    %422 = vperm.xlu0 %421, %v367
    %v423 = vpop.permute.xlu0 %422
    %424 = vset.pattern.permute.xlu0 0
    %425 = vperm.xlu0 %424, %v368
    %v426 = vpop.permute.xlu0 %425
    %427 = vset.pattern.permute.xlu0 0
    %428 = vperm.xlu0 %427, %v369
    %v429 = vpop.permute.xlu0 %428
    %430 = vset.pattern.permute.xlu0 0
    %431 = vperm.xlu0 %430, %v370
    %v432 = vpop.permute.xlu0 %431
    %433 = vset.pattern.permute.xlu0 0
    %434 = vperm.xlu0 %433, %v371
    %v435 = vpop.permute.xlu0 %434
    %436 = vset.pattern.permute.xlu0 0
    %437 = vperm.xlu0 %436, %v372
    %v438 = vpop.permute.xlu0 %437
    %439 = vset.pattern.permute.xlu0 0
    %440 = vperm.xlu0 %439, %v373
    %v441 = vpop.permute.xlu0 %440
    %442 = vset.pattern.permute.xlu0 0
    %443 = vperm.xlu0 %442, %v374
    %v444 = vpop.permute.xlu0 %443
    %445 = vset.pattern.permute.xlu0 0
    %446 = vperm.xlu0 %445, %v375
    %v447 = vpop.permute.xlu0 %446
    %448 = vset.pattern.permute.xlu0 0
    %449 = vperm.xlu0 %448, %v376
    %v450 = vpop.permute.xlu0 %449
    %451 = vset.pattern.permute.xlu0 0
    %452 = vperm.xlu0 %451, %v377
    %v453 = vpop.permute.xlu0 %452
    %454 = vset.pattern.permute.xlu0 0
    %455 = vperm.xlu0 %454, %v378
    %v456 = vpop.permute.xlu0 %455
    %457 = vset.pattern.permute.xlu0 0
    %458 = vperm.xlu0 %457, %v379
    %v459 = vpop.permute.xlu0 %458
    %460 = vset.pattern.permute.xlu0 0
    %461 = vperm.xlu0 %460, %v380
    %v462 = vpop.permute.xlu0 %461
    %463 = vset.pattern.permute.xlu0 0
    %464 = vperm.xlu0 %463, %v381
    %v465 = vpop.permute.xlu0 %464
    %466 = vset.pattern.permute.xlu0 0
    %467 = vperm.xlu0 %466, %v382
    %v468 = vpop.permute.xlu0 %467
    %469 = vset.pattern.permute.xlu0 0
    %470 = vperm.xlu0 %469, %v383
    %v471 = vpop.permute.xlu0 %470
    %472 = vset.pattern.permute.xlu0 0
    %473 = vperm.xlu0 %472, %v384
    %v474 = vpop.permute.xlu0 %473
    %475 = vset.pattern.permute.xlu0 0
    %476 = vperm.xlu0 %475, %v385
    %v477 = vpop.permute.xlu0 %476
    %478 = vset.pattern.permute.xlu0 0
    %479 = vperm.xlu0 %478, %v386
    %v480 = vpop.permute.xlu0 %479
    %481 = vset.pattern.permute.xlu0 0
    %482 = vperm.xlu0 %481, %v387
    %v483 = vpop.permute.xlu0 %482
    %484 = vset.pattern.permute.xlu0 0
    %485 = vperm.xlu0 %484, %v388
    %v486 = vpop.permute.xlu0 %485
    %487 = vset.pattern.permute.xlu0 0
    %488 = vperm.xlu0 %487, %v389
    %v489 = vpop.permute.xlu0 %488
    %490 = vset.pattern.permute.xlu0 0
    %491 = vperm.xlu0 %490, %v390
    %v492 = vpop.permute.xlu0 %491
    %493 = vset.pattern.permute.xlu0 0
    %494 = vperm.xlu0 %493, %v391
    %v495 = vpop.permute.xlu0 %494
    %496 = vset.pattern.permute.xlu0 0
    %497 = vperm.xlu0 %496, %v392
    %v498 = vpop.permute.xlu0 %497
    %499 = vset.pattern.permute.xlu0 0
    %500 = vperm.xlu0 %499, %v393
    %v501 = vpop.permute.xlu0 %500
    %vm502 = vcmp.eq.s32.totalorder %v396, %v357
    %vm503 = vcmp.eq.s32.totalorder %v399, %v357
    %vm504 = vcmp.eq.s32.totalorder %v402, %v357
    %vm505 = vcmp.eq.s32.totalorder %v405, %v357
    %vm506 = vcmp.eq.s32.totalorder %v408, %v357
    %vm507 = vcmp.eq.s32.totalorder %v411, %v357
    %vm508 = vcmp.eq.s32.totalorder %v414, %v357
    %vm509 = vcmp.eq.s32.totalorder %v417, %v357
    %vm510 = vcmp.eq.s32.totalorder %v420, %v357
    %vm511 = vcmp.eq.s32.totalorder %v423, %v357
    %vm512 = vcmp.eq.s32.totalorder %v426, %v357
    %vm513 = vcmp.eq.s32.totalorder %v429, %v357
    %vm514 = vcmp.eq.s32.totalorder %v432, %v357
    %vm515 = vcmp.eq.s32.totalorder %v435, %v357
    %vm516 = vcmp.eq.s32.totalorder %v438, %v357
    %vm517 = vcmp.eq.s32.totalorder %v441, %v357
    %vm518 = vcmp.eq.s32.totalorder %v444, %v357
    %vm519 = vcmp.eq.s32.totalorder %v447, %v357
    %vm520 = vcmp.eq.s32.totalorder %v450, %v357
    %vm521 = vcmp.eq.s32.totalorder %v453, %v357
    %vm522 = vcmp.eq.s32.totalorder %v456, %v357
    %vm523 = vcmp.eq.s32.totalorder %v459, %v357
    %vm524 = vcmp.eq.s32.totalorder %v462, %v357
    %vm525 = vcmp.eq.s32.totalorder %v465, %v357
    %vm526 = vcmp.eq.s32.totalorder %v468, %v357
    %vm527 = vcmp.eq.s32.totalorder %v471, %v357
    %vm528 = vcmp.eq.s32.totalorder %v474, %v357
    %vm529 = vcmp.eq.s32.totalorder %v477, %v357
    %vm530 = vcmp.eq.s32.totalorder %v480, %v357
    %vm531 = vcmp.eq.s32.totalorder %v483, %v357
    %vm532 = vcmp.eq.s32.totalorder %v486, %v357
    %vm533 = vcmp.eq.s32.totalorder %v489, %v357
    %vm534 = vcmp.eq.s32.totalorder %v492, %v357
    %vm535 = vcmp.eq.s32.totalorder %v495, %v357
    %vm536 = vcmp.eq.s32.totalorder %v498, %v357
    %vm537 = vcmp.eq.s32.totalorder %v501, %v357
    %v538 = vsel %vm502, 1, 0
    %v539 = vsel %vm503, 1, 0
    %v540 = vsel %vm504, 1, 0
    %v541 = vsel %vm505, 1, 0
    %v542 = vsel %vm506, 1, 0
    %v543 = vsel %vm507, 1, 0
    %v544 = vsel %vm508, 1, 0
    %v545 = vsel %vm509, 1, 0
    %v546 = vsel %vm510, 1, 0
    %v547 = vsel %vm511, 1, 0
    %v548 = vsel %vm512, 1, 0
    %v549 = vsel %vm513, 1, 0
    %v550 = vsel %vm514, 1, 0
    %v551 = vsel %vm515, 1, 0
    %v552 = vsel %vm516, 1, 0
    %v553 = vsel %vm517, 1, 0
    %v554 = vsel %vm518, 1, 0
    %v555 = vsel %vm519, 1, 0
    %v556 = vsel %vm520, 1, 0
    %v557 = vsel %vm521, 1, 0
    %v558 = vsel %vm522, 1, 0
    %v559 = vsel %vm523, 1, 0
    %v560 = vsel %vm524, 1, 0
    %v561 = vsel %vm525, 1, 0
    %v562 = vsel %vm526, 1, 0
    %v563 = vsel %vm527, 1, 0
    %v564 = vsel %vm528, 1, 0
    %v565 = vsel %vm529, 1, 0
    %v566 = vsel %vm530, 1, 0
    %v567 = vsel %vm531, 1, 0
    %v568 = vsel %vm532, 1, 0
    %v569 = vsel %vm533, 1, 0
    %v570 = vsel %vm534, 1, 0
    %v571 = vsel %vm535, 1, 0
    %v572 = vsel %vm536, 1, 0
    %v573 = vsel %vm537, 1, 0
    %v574 = vcvt.s32.f32 %v538
    %v575 = vcvt.s32.f32 %v539
    %v576 = vcvt.s32.f32 %v540
    %v577 = vcvt.s32.f32 %v541
    %v578 = vcvt.s32.f32 %v542
    %v579 = vcvt.s32.f32 %v543
    %v580 = vcvt.s32.f32 %v544
    %v581 = vcvt.s32.f32 %v545
    %v582 = vcvt.s32.f32 %v546
    %v583 = vcvt.s32.f32 %v547
    %v584 = vcvt.s32.f32 %v548
    %v585 = vcvt.s32.f32 %v549
    %v586 = vcvt.s32.f32 %v550
    %v587 = vcvt.s32.f32 %v551
    %v588 = vcvt.s32.f32 %v552
    %v589 = vcvt.s32.f32 %v553
    %v590 = vcvt.s32.f32 %v554
    %v591 = vcvt.s32.f32 %v555
    %v592 = vcvt.s32.f32 %v556
    %v593 = vcvt.s32.f32 %v557
    %v594 = vcvt.s32.f32 %v558
    %v595 = vcvt.s32.f32 %v559
    %v596 = vcvt.s32.f32 %v560
    %v597 = vcvt.s32.f32 %v561
    %v598 = vcvt.s32.f32 %v562
    %v599 = vcvt.s32.f32 %v563
    %v600 = vcvt.s32.f32 %v564
    %v601 = vcvt.s32.f32 %v565
    %v602 = vcvt.s32.f32 %v566
    %v603 = vcvt.s32.f32 %v567
    %v604 = vcvt.s32.f32 %v568
    %v605 = vcvt.s32.f32 %v569
    %v606 = vcvt.s32.f32 %v570
    %v607 = vcvt.s32.f32 %v571
    %v608 = vcvt.s32.f32 %v572
    %v609 = vcvt.s32.f32 %v573
    %v610 = vpack.c.bf16 %v575, %v574
    %v611 = vpack.c.bf16 %v577, %v576
    %v612 = vpack.c.bf16 %v579, %v578
    %v613 = vpack.c.bf16 %v581, %v580
    %v614 = vpack.c.bf16 %v583, %v582
    %v615 = vpack.c.bf16 %v585, %v584
    %v616 = vpack.c.bf16 %v587, %v586
    %v617 = vpack.c.bf16 %v589, %v588
    %v618 = vpack.c.bf16 %v591, %v590
    %v619 = vpack.c.bf16 %v593, %v592
    %v620 = vpack.c.bf16 %v595, %v594
    %v621 = vpack.c.bf16 %v597, %v596
    %v622 = vpack.c.bf16 %v599, %v598
    %v623 = vpack.c.bf16 %v601, %v600
    %v624 = vpack.c.bf16 %v603, %v602
    %v625 = vpack.c.bf16 %v605, %v604
    %v626 = vpack.c.bf16 %v607, %v606
    %v627 = vpack.c.bf16 %v609, %v608
    %v636 = vunpack.c.l.b16 %v348
    %v637 = vunpack.c.l.b16 %v349
    %v638 = vunpack.c.l.b16 %v350
    %v639 = vunpack.c.l.b16 %v351
    %v640 = vunpack.c.l.b16 %v352
    %v641 = vunpack.c.l.b16 %v353
    %v642 = vunpack.c.l.b16 %v354
    %v643 = vunpack.c.l.b16 %v355
    %v644 = vpack.c.b16 %v637, %v636
    %v645 = vpack.c.b16 %v639, %v638
    %v646 = vpack.c.b16 %v641, %v640
    %v647 = vpack.c.b16 %v643, %v642
    %vm652 = vcmask 523264
    %v654 = vsel %vm652, %v610, 0
    %v657 = vsel %vm652, %v611, 0
    %v660 = vsel %vm652, %v612, 0
    %v663 = vsel %vm652, %v613, 0
    %v666 = vsel %vm652, %v614, 0
    %v669 = vsel %vm652, %v615, 0
    %v672 = vsel %vm652, %v616, 0
    %v675 = vsel %vm652, %v617, 0
    %v678 = vsel %vm652, %v618, 0
    %v681 = vsel %vm652, %v619, 0
    %v684 = vsel %vm652, %v620, 0
    %v687 = vsel %vm652, %v621, 0
    %v690 = vsel %vm652, %v622, 0
    %v693 = vsel %vm652, %v623, 0
    %v696 = vsel %vm652, %v624, 0
    %v699 = vsel %vm652, %v625, 0
    %v702 = vsel %vm652, %v626, 0
    %v705 = vsel %vm652, %v627, 0
    %707 = vmatpush.bf16.msra.mxu0 0
    %708 = vmatpush.bf16.msra.mxu0 0
    %709 = vmatpush.bf16.msra.mxu0 0
    %710 = vmatpush.bf16.msra.mxu0 0
    %711 = vmatpush.bf16.msra.mxu0 %v258
    %712 = vmatpush.bf16.msra.mxu0 %v257
    %713 = vmatpush.bf16.msra.mxu0 %v256
    %714 = vmatpush.bf16.msra.mxu0 %v255
    %715 = vmatmul.bf16.gmra.mxu0 %v654
    %v716 = vpop.f32.mrf.mxu0
    %v717 = vadd.f32 0.0, %v716
    %v718 = vpop.f32.mrf.mxu0
    %v719 = vadd.f32 0.0, %v718
    %720 = vmatmul.bf16.gmra.mxu0 %v657
    %v721 = vpop.f32.mrf.mxu0
    %v722 = vadd.f32 0.0, %v721
    %v723 = vpop.f32.mrf.mxu0
    %v724 = vadd.f32 0.0, %v723
    %725 = vmatmul.bf16.gmra.mxu0 %v660
    %v726 = vpop.f32.mrf.mxu0
    %v727 = vpop.f32.mrf.mxu0
    %728 = vmatmul.bf16.gmra.mxu0 %v663
    %v729 = vpop.f32.mrf.mxu0
    %v730 = vpop.f32.mrf.mxu0
    %731 = vmatmul.bf16.gmra.mxu0 %v666
    %v732 = vpop.f32.mrf.mxu0
    %v733 = vpop.f32.mrf.mxu0
    %734 = vmatmul.bf16.gmra.mxu0 %v669
    %v735 = vpop.f32.mrf.mxu0
    %v736 = vpop.f32.mrf.mxu0
    %737 = vmatmul.bf16.gmra.mxu0 %v672
    %v738 = vpop.f32.mrf.mxu0
    %v739 = vpop.f32.mrf.mxu0
    %740 = vmatmul.bf16.gmra.mxu0 %v675
    %v741 = vpop.f32.mrf.mxu0
    %v742 = vpop.f32.mrf.mxu0
    %743 = vmatmul.bf16.gmra.mxu0 %v678
    %v744 = vpop.f32.mrf.mxu0
    %v745 = vpop.f32.mrf.mxu0
    %746 = vmatmul.bf16.gmra.mxu0 %v681
    %v747 = vpop.f32.mrf.mxu0
    %v748 = vpop.f32.mrf.mxu0
    %749 = vmatmul.bf16.gmra.mxu0 %v684
    %v750 = vpop.f32.mrf.mxu0
    %v751 = vpop.f32.mrf.mxu0
    %752 = vmatmul.bf16.gmra.mxu0 %v687
    %v753 = vpop.f32.mrf.mxu0
    %v754 = vpop.f32.mrf.mxu0
    %755 = vmatmul.bf16.gmra.mxu0 %v690
    %v756 = vpop.f32.mrf.mxu0
    %v757 = vpop.f32.mrf.mxu0
    %758 = vmatmul.bf16.gmra.mxu0 %v693
    %v759 = vpop.f32.mrf.mxu0
    %v760 = vpop.f32.mrf.mxu0
    %761 = vmatmul.bf16.gmra.mxu0 %v696
    %v762 = vpop.f32.mrf.mxu0
    %v763 = vpop.f32.mrf.mxu0
    %764 = vmatmul.bf16.gmra.mxu0 %v699
    %v765 = vpop.f32.mrf.mxu0
    %v766 = vpop.f32.mrf.mxu0
    %767 = vmatmul.bf16.gmra.mxu0 %v702
    %v768 = vpop.f32.mrf.mxu0
    %v769 = vpop.f32.mrf.mxu0
    %770 = vmatmul.bf16.gmra.mxu0 %v705
    %v771 = vpop.f32.mrf.mxu0
    %v772 = vpop.f32.mrf.mxu0
    %773 = vdwg.mxu0
    %774 = vmatpush.bf16.msra.mxu0 0
    %775 = vmatpush.bf16.msra.mxu0 0
    %776 = vmatpush.bf16.msra.mxu0 0
    %777 = vmatpush.bf16.msra.mxu0 0
    %778 = vmatpush.bf16.msra.mxu0 %v647
    %779 = vmatpush.bf16.msra.mxu0 %v646
    %780 = vmatpush.bf16.msra.mxu0 %v645
    %781 = vmatpush.bf16.msra.mxu0 %v644
    %782 = vmatmul.bf16.gmra.mxu0 %v654
    %v783 = vpop.f32.mrf.mxu0
    %v784 = vpop.f32.mrf.mxu0
    %785 = vmatmul.bf16.gmra.mxu0 %v657
    %v786 = vpop.f32.mrf.mxu0
    %v787 = vpop.f32.mrf.mxu0
    %788 = vmatmul.bf16.gmra.mxu0 %v660
    %v789 = vpop.f32.mrf.mxu0
    %v790 = vadd.f32 0.0, %v789
    %v791 = vpop.f32.mrf.mxu0
    %v792 = vadd.f32 0.0, %v791
    %793 = vmatmul.bf16.gmra.mxu0 %v663
    %v794 = vpop.f32.mrf.mxu0
    %v795 = vadd.f32 0.0, %v794
    %v796 = vpop.f32.mrf.mxu0
    %v797 = vadd.f32 0.0, %v796
    %798 = vmatmul.bf16.gmra.mxu0 %v666
    %v799 = vpop.f32.mrf.mxu0
    %v800 = vadd.f32 0.0, %v799
    %v801 = vpop.f32.mrf.mxu0
    %v802 = vadd.f32 0.0, %v801
    %803 = vmatmul.bf16.gmra.mxu0 %v669
    %v804 = vpop.f32.mrf.mxu0
    %v805 = vadd.f32 0.0, %v804
    %v806 = vpop.f32.mrf.mxu0
    %v807 = vadd.f32 0.0, %v806
    %808 = vmatmul.bf16.gmra.mxu0 %v672
    %v809 = vpop.f32.mrf.mxu0
    %v810 = vadd.f32 0.0, %v809
    %v811 = vpop.f32.mrf.mxu0
    %v812 = vadd.f32 0.0, %v811
    %813 = vmatmul.bf16.gmra.mxu0 %v675
    %v814 = vpop.f32.mrf.mxu0
    %v815 = vadd.f32 0.0, %v814
    %v816 = vpop.f32.mrf.mxu0
    %v817 = vadd.f32 0.0, %v816
    %818 = vmatmul.bf16.gmra.mxu0 %v678
    %v819 = vpop.f32.mrf.mxu0
    %v820 = vadd.f32 0.0, %v819
    %v821 = vpop.f32.mrf.mxu0
    %v822 = vadd.f32 0.0, %v821
    %823 = vmatmul.bf16.gmra.mxu0 %v681
    %v824 = vpop.f32.mrf.mxu0
    %v825 = vadd.f32 0.0, %v824
    %v826 = vpop.f32.mrf.mxu0
    %v827 = vadd.f32 0.0, %v826
    %828 = vmatmul.bf16.gmra.mxu0 %v684
    %v829 = vpop.f32.mrf.mxu0
    %v830 = vadd.f32 0.0, %v829
    %v831 = vpop.f32.mrf.mxu0
    %v832 = vadd.f32 0.0, %v831
    %833 = vmatmul.bf16.gmra.mxu0 %v687
    %v834 = vpop.f32.mrf.mxu0
    %v835 = vadd.f32 0.0, %v834
    %v836 = vpop.f32.mrf.mxu0
    %v837 = vadd.f32 0.0, %v836
    %838 = vmatmul.bf16.gmra.mxu0 %v690
    %v839 = vpop.f32.mrf.mxu0
    %v840 = vadd.f32 0.0, %v839
    %v841 = vpop.f32.mrf.mxu0
    %v842 = vadd.f32 0.0, %v841
    %843 = vmatmul.bf16.gmra.mxu0 %v693
    %v844 = vpop.f32.mrf.mxu0
    %v845 = vadd.f32 0.0, %v844
    %v846 = vpop.f32.mrf.mxu0
    %v847 = vadd.f32 0.0, %v846
    %848 = vmatmul.bf16.gmra.mxu0 %v696
    %v849 = vpop.f32.mrf.mxu0
    %v850 = vadd.f32 0.0, %v849
    %v851 = vpop.f32.mrf.mxu0
    %v852 = vadd.f32 0.0, %v851
    %853 = vmatmul.bf16.gmra.mxu0 %v699
    %v854 = vpop.f32.mrf.mxu0
    %v855 = vadd.f32 0.0, %v854
    %v856 = vpop.f32.mrf.mxu0
    %v857 = vadd.f32 0.0, %v856
    %858 = vmatmul.bf16.gmra.mxu0 %v702
    %v859 = vpop.f32.mrf.mxu0
    %v860 = vadd.f32 0.0, %v859
    %v861 = vpop.f32.mrf.mxu0
    %v862 = vadd.f32 0.0, %v861
    %863 = vmatmul.bf16.gmra.mxu0 %v705
    %v864 = vpop.f32.mrf.mxu0
    %v865 = vadd.f32 0.0, %v864
    %v866 = vpop.f32.mrf.mxu0
    %v867 = vadd.f32 0.0, %v866
    %868 = vdwg.mxu0
    %v869 = vmax.f32 %v790, %v800
    %v870 = vmax.f32 %v792, %v802
    %v871 = vmax.f32 %v795, %v805
    %v872 = vmax.f32 %v797, %v807
    %v873 = vmax.f32 %v810, %v820
    %v874 = vmax.f32 %v812, %v822
    %v875 = vmax.f32 %v815, %v825
    %v876 = vmax.f32 %v817, %v827
    %v877 = vmax.f32 %v830, %v840
    %v878 = vmax.f32 %v832, %v842
    %v879 = vmax.f32 %v835, %v845
    %v880 = vmax.f32 %v837, %v847
    %v881 = vmax.f32 %v850, %v860
    %v882 = vmax.f32 %v852, %v862
    %v883 = vmax.f32 %v855, %v865
    %v884 = vmax.f32 %v857, %v867
    %v885 = vmax.f32 %v869, %v873
    %v886 = vmax.f32 %v870, %v874
    %v887 = vmax.f32 %v871, %v875
    %v888 = vmax.f32 %v872, %v876
    %v889 = vmax.f32 %v877, %v881
    %v890 = vmax.f32 %v878, %v882
    %v891 = vmax.f32 %v879, %v883
    %v892 = vmax.f32 %v880, %v884
    %v893 = vmax.f32 %v885, %v889
    %v894 = vmax.f32 %v886, %v890
    %v895 = vmax.f32 %v887, %v891
    %v896 = vmax.f32 %v888, %v892
    %v897 = vpack.c.bf16 %v719, %v717
    %v898 = vpack.c.bf16 %v894, %v893
    %v899 = vpack.c.bf16 %v724, %v722
    %v900 = vpack.c.bf16 %v896, %v895
    %v901 = vld [vmem:[%s4] sm:$0xf]
    %v902 = vld [vmem:[%s4 + $0x4] sm:$0xf]
    %v903 = vld [vmem:[%s4 + $0x8] sm:$0xf]
    %v904 = vld [vmem:[%s4 + $0xc] sm:$0xf]
    %v905 = vld [vmem:[%s4 + $0x10] sm:$0xf]
    %v906 = vld [vmem:[%s4 + $0x14] sm:$0xf]
    %v907 = vld [vmem:[%s4 + $0x18] sm:$0xf]
    %v908 = vld [vmem:[%s4 + $0x1c] sm:$0xf]
    %v909 = vld [vmem:[%s4 + $0x20] sm:$0xf]
    %v910 = vld [vmem:[%s4 + $0x24] sm:$0xf]
    %v911 = vld [vmem:[%s4 + $0x28] sm:$0xf]
    %v912 = vld [vmem:[%s4 + $0x2c] sm:$0xf]
    %v913 = vld [vmem:[%s4 + $0x30] sm:$0xf]
    %v914 = vld [vmem:[%s4 + $0x34] sm:$0xf]
    %v915 = vld [vmem:[%s4 + $0x38] sm:$0xf]
    %v916 = vld [vmem:[%s4 + $0x3c] sm:$0xf]
    %v917 = vld [vmem:[%s4 + $0x40] sm:$0xf]
    %v918 = vld [vmem:[%s4 + $0x44] sm:$0xf]
    %v919 = vld [vmem:[%s4 + $0x48] sm:$0xf]
    %v920 = vld [vmem:[%s4 + $0x4c] sm:$0xf]
    %v921 = vld [vmem:[%s4 + $0x50] sm:$0xf]
    %v922 = vld [vmem:[%s4 + $0x54] sm:$0xf]
    %v923 = vld [vmem:[%s4 + $0x58] sm:$0xf]
    %v924 = vld [vmem:[%s4 + $0x5c] sm:$0xf]
    %v925 = vld [vmem:[%s4 + $0x60] sm:$0xf]
    %v926 = vld [vmem:[%s4 + $0x64] sm:$0xf]
    %v927 = vld [vmem:[%s4 + $0x68] sm:$0xf]
    %v928 = vld [vmem:[%s4 + $0x6c] sm:$0xf]
    %v929 = vld [vmem:[%s4 + $0x70] sm:$0xf]
    %v930 = vld [vmem:[%s4 + $0x74] sm:$0xf]
    %v931 = vld [vmem:[%s4 + $0x78] sm:$0xf]
    %v932 = vld [vmem:[%s4 + $0x7c] sm:$0xf]
    %v933 = vld [vmem:[#allocation7] sm:$0x1]
    %v935 = vperm.slane %v933, 0
    %v969 = vunpack.c.l.b16 %v901
    %v970 = vunpack.c.l.b16 %v902
    %v971 = vunpack.c.l.b16 %v903
    %v972 = vunpack.c.l.b16 %v904
    %v973 = vunpack.c.l.b16 %v905
    %v974 = vunpack.c.l.b16 %v906
    %v975 = vunpack.c.l.b16 %v907
    %v976 = vunpack.c.l.b16 %v908
    %v977 = vunpack.c.l.b16 %v909
    %v978 = vunpack.c.l.b16 %v910
    %v979 = vunpack.c.l.b16 %v911
    %v980 = vunpack.c.l.b16 %v912
    %v981 = vunpack.c.l.b16 %v913
    %v982 = vunpack.c.l.b16 %v914
    %v983 = vunpack.c.l.b16 %v915
    %v984 = vunpack.c.l.b16 %v916
    %v985 = vunpack.c.l.b16 %v917
    %v986 = vunpack.c.l.b16 %v918
    %v987 = vunpack.c.l.b16 %v919
    %v988 = vunpack.c.l.b16 %v920
    %v989 = vunpack.c.l.b16 %v921
    %v990 = vunpack.c.l.b16 %v922
    %v991 = vunpack.c.l.b16 %v923
    %v992 = vunpack.c.l.b16 %v924
    %v993 = vunpack.c.l.b16 %v925
    %v994 = vunpack.c.l.b16 %v926
    %v995 = vunpack.c.l.b16 %v927
    %v996 = vunpack.c.l.b16 %v928
    %v997 = vunpack.c.l.b16 %v929
    %v998 = vunpack.c.l.b16 %v930
    %v999 = vunpack.c.l.b16 %v931
    %v1000 = vunpack.c.l.b16 %v932
    %v1001 = vpack.c.b16 %v970, %v969
    %v1002 = vpack.c.b16 %v972, %v971
    %v1003 = vpack.c.b16 %v974, %v973
    %v1004 = vpack.c.b16 %v976, %v975
    %v1005 = vpack.c.b16 %v978, %v977
    %v1006 = vpack.c.b16 %v980, %v979
    %v1007 = vpack.c.b16 %v982, %v981
    %v1008 = vpack.c.b16 %v984, %v983
    %v1009 = vpack.c.b16 %v986, %v985
    %v1010 = vpack.c.b16 %v988, %v987
    %v1011 = vpack.c.b16 %v990, %v989
    %v1012 = vpack.c.b16 %v992, %v991
    %v1013 = vpack.c.b16 %v994, %v993
    %v1014 = vpack.c.b16 %v996, %v995
    %v1015 = vpack.c.b16 %v998, %v997
    %v1016 = vpack.c.b16 %v1000, %v999
    %1033 = vmatpush.bf16.msra.mxu0 %v1008
    %1034 = vmatpush.bf16.msra.mxu0 %v1007
    %1035 = vmatpush.bf16.msra.mxu0 %v1006
    %1036 = vmatpush.bf16.msra.mxu0 %v1005
    %1037 = vmatpush.bf16.msra.mxu0 %v1004
    %1038 = vmatpush.bf16.msra.mxu0 %v1003
    %1039 = vmatpush.bf16.msra.mxu0 %v1002
    %1040 = vmatpush.bf16.msra.mxu0 %v1001
    %1041 = vmatmul.bf16.gmra.mxu0 %v897
    %v1042 = vpop.f32.mrf.mxu0
    %v1043 = vadd.f32 %v935, %v1042
    %v1044 = vpop.f32.mrf.mxu0
    %v1045 = vadd.f32 %v935, %v1044
    %1046 = vmatmul.bf16.gmra.mxu0 %v899
    %v1047 = vpop.f32.mrf.mxu0
    %v1048 = vadd.f32 %v935, %v1047
    %v1049 = vpop.f32.mrf.mxu0
    %v1050 = vadd.f32 %v935, %v1049
    %1051 = vdwg.mxu0
    %1052 = vmatpush.bf16.msra.mxu0 %v1016
    %1053 = vmatpush.bf16.msra.mxu0 %v1015
    %1054 = vmatpush.bf16.msra.mxu0 %v1014
    %1055 = vmatpush.bf16.msra.mxu0 %v1013
    %1056 = vmatpush.bf16.msra.mxu0 %v1012
    %1057 = vmatpush.bf16.msra.mxu0 %v1011
    %1058 = vmatpush.bf16.msra.mxu0 %v1010
    %1059 = vmatpush.bf16.msra.mxu0 %v1009
    %1060 = vmatmul.bf16.gmra.mxu0 %v898
    %v1061 = vpop.f32.mrf.mxu0
    %v1062 = vadd.f32 %v1043, %v1061
    %v1063 = vpop.f32.mrf.mxu0
    %v1064 = vadd.f32 %v1045, %v1063
    %1065 = vmatmul.bf16.gmra.mxu0 %v900
    %v1066 = vpop.f32.mrf.mxu0
    %v1067 = vadd.f32 %v1048, %v1066
    %v1068 = vpop.f32.mrf.mxu0
    %v1069 = vadd.f32 %v1050, %v1068
    %1070 = vdwg.mxu0
    %v1071 = vmax.f32 %v1062, 0.0
    %v1072 = vmax.f32 %v1064, 0.0
    %v1073 = vmax.f32 %v1067, 0.0
    %v1074 = vmax.f32 %v1069, 0.0
    %v1075 = vadd.f32 %v1071, %v1072
    %v1076 = vadd.f32 %v1075, %v1073
    %v1077 = vadd.f32 %v1076, %v1074
    %v1078 = vrot.slane %v1077, 4
    %v1079 = vadd.f32 %v1077, %v1078
    %v1080 = vrot.slane %v1079, 2
    %v1081 = vadd.f32 %v1079, %v1080
    %v1082 = vrot.slane %v1081, 1
    %v1083 = vadd.f32 %v1081, %v1082
    %v1084 = vrcp.pop 32.0
    %v1085 = vmul.f32 32.0, %v1084
    %v1086 = vsub.f32 1.0, %v1085
    %v1087 = vmul.f32 %v1084, %v1086
    %v1088 = vadd.f32 %v1084, %v1087
    %vm1089 = vweird.f32 %v1084
    %v1090 = vsel %vm1089, %v1084, %v1088
    %v1091 = vmul.f32 %v1083, %v1090
    %v1092 = vsub.f32 %v1071, %v1091
    %v1093 = vsub.f32 %v1072, %v1091
    %v1094 = vsub.f32 %v1073, %v1091
    %v1095 = vsub.f32 %v1074, %v1091
    %v1096 = vmul.f32 %v1092, %v1092
    %v1097 = vmul.f32 %v1093, %v1093
    %v1098 = vmul.f32 %v1094, %v1094
    %v1099 = vmul.f32 %v1095, %v1095
    %v1100 = vadd.f32 %v1096, %v1097
    %v1101 = vadd.f32 %v1100, %v1098
    %v1102 = vadd.f32 %v1101, %v1099
    %v1103 = vrot.slane %v1102, 4
    %v1104 = vadd.f32 %v1102, %v1103
    %v1105 = vrot.slane %v1104, 2
    %v1106 = vadd.f32 %v1104, %v1105
    %v1107 = vrot.slane %v1106, 1
    %v1108 = vadd.f32 %v1106, %v1107
    %v1109 = vmul.f32 %v1108, %v1090
    %v1110 = vadd.f32 %v1109, 1e-05
    %v1111 = vrsqrt.pop %v1110
    %v1112 = vmul.f32 %v1111, %v1110
    %v1113 = vmul.f32 %v1112, %v1111
    %v1114 = vmul.f32 0.5, %v1113
    %v1115 = vsub.f32 1.5, %v1114
    %v1116 = vmul.f32 %v1111, %v1115
    %vm1117 = vweird.f32 %v1110
    %vm1118 = vweird.f32 %v1111
    %vm1119 = vmor %vm1117, %vm1118
    %v1120 = vsel %vm1119, %v1111, %v1116
    %v1121 = vmul.f32 %v1092, %v1120
    %v1122 = vmul.f32 %v1093, %v1120
    %v1123 = vmul.f32 %v1094, %v1120
    %v1124 = vmul.f32 %v1095, %v1120
    %v1125 = vld [vmem:[#allocation8] sm:$0x1]
    %v1127 = vperm.slane %v1125, 0
    %v1129 = vmul.f32 %v1121, %v1127
    %v1130 = vmul.f32 %v1122, %v1127
    %v1131 = vmul.f32 %v1123, %v1127
    %v1132 = vmul.f32 %v1124, %v1127
    %v1133 = vld [vmem:[#allocation10] sm:$0x1]
    %v1135 = vperm.slane %v1133, 0
    %v1137 = vadd.f32 %v1129, %v1135
    %v1138 = vadd.f32 %v1130, %v1135
    %v1139 = vadd.f32 %v1131, %v1135
    %v1140 = vadd.f32 %v1132, %v1135
    %v1141 = vld [vmem:[#allocation11] sm:$0xff]
    %v1142 = vld [vmem:[#allocation11 + $0x8] sm:$0xff]
    %v1143 = vld [vmem:[#allocation11 + $0x10] sm:$0xff]
    %v1144 = vld [vmem:[#allocation11 + $0x18] sm:$0xff]
    %v1145 = vmul.f32 %v1137, %v1141
    %v1146 = vmul.f32 %v1138, %v1142
    %v1147 = vmul.f32 %v1139, %v1143
    %v1148 = vmul.f32 %v1140, %v1144
    %v1149 = vmul.f32 %v1145, %v1145
    %v1150 = vmul.f32 %v1146, %v1146
    %v1151 = vmul.f32 %v1147, %v1147
    %v1152 = vmul.f32 %v1148, %v1148
    %1153 = vadd.xlane.f32.xlu0 %v1149
    %v1154 = vpop.xlane.xlu0 %1153
    %1155 = vadd.xlane.f32.xlu0 %v1150
    %v1156 = vpop.xlane.xlu0 %1155
    %1157 = vadd.xlane.f32.xlu0 %v1151
    %v1158 = vpop.xlane.xlu0 %1157
    %1159 = vadd.xlane.f32.xlu0 %v1152
    %v1160 = vpop.xlane.xlu0 %1159
    %v1161 = vrsqrt.pop %v1154
    %v1162 = vmul.f32 %v1161, %v1154
    %v1163 = vmul.f32 %v1162, %v1161
    %v1164 = vmul.f32 0.5, %v1163
    %v1165 = vsub.f32 1.5, %v1164
    %v1166 = vmul.f32 %v1161, %v1165
    %v1167 = vmul.f32 %v1154, %v1166
    %vm1168 = vcmp.eq.f32.partialorder %v1154, inf
    %v1169 = vsel %vm1168, %v1154, %v1167
    %vm1170 = vcmp.eq.f32.partialorder %v1154, 0.0
    %v1171 = vand.u32 %v1154, 2147483648
    %v1172 = vsel %vm1170, %v1171, %v1169
    %v1173 = vrsqrt.pop %v1156
    %v1174 = vmul.f32 %v1173, %v1156
    %v1175 = vmul.f32 %v1174, %v1173
    %v1176 = vmul.f32 0.5, %v1175
    %v1177 = vsub.f32 1.5, %v1176
    %v1178 = vmul.f32 %v1173, %v1177
    %v1179 = vmul.f32 %v1156, %v1178
    %vm1180 = vcmp.eq.f32.partialorder %v1156, inf
    %v1181 = vsel %vm1180, %v1156, %v1179
    %vm1182 = vcmp.eq.f32.partialorder %v1156, 0.0
    %v1183 = vand.u32 %v1156, 2147483648
    %v1184 = vsel %vm1182, %v1183, %v1181
    %v1185 = vrsqrt.pop %v1158
    %v1186 = vmul.f32 %v1185, %v1158
    %v1187 = vmul.f32 %v1186, %v1185
    %v1188 = vmul.f32 0.5, %v1187
    %v1189 = vsub.f32 1.5, %v1188
    %v1190 = vmul.f32 %v1185, %v1189
    %v1191 = vmul.f32 %v1158, %v1190
    %vm1192 = vcmp.eq.f32.partialorder %v1158, inf
    %v1193 = vsel %vm1192, %v1158, %v1191
    %vm1194 = vcmp.eq.f32.partialorder %v1158, 0.0
    %v1195 = vand.u32 %v1158, 2147483648
    %v1196 = vsel %vm1194, %v1195, %v1193
    %v1197 = vrsqrt.pop %v1160
    %v1198 = vmul.f32 %v1197, %v1160
    %v1199 = vmul.f32 %v1198, %v1197
    %v1200 = vmul.f32 0.5, %v1199
    %v1201 = vsub.f32 1.5, %v1200
    %v1202 = vmul.f32 %v1197, %v1201
    %v1203 = vmul.f32 %v1160, %v1202
    %vm1204 = vcmp.eq.f32.partialorder %v1160, inf
    %v1205 = vsel %vm1204, %v1160, %v1203
    %vm1206 = vcmp.eq.f32.partialorder %v1160, 0.0
    %v1207 = vand.u32 %v1160, 2147483648
    %v1208 = vsel %vm1206, %v1207, %v1205
    %v1209 = vadd.f32 %v1172, 1e-06
    %v1210 = vadd.f32 %v1184, 1e-06
    %v1211 = vadd.f32 %v1196, 1e-06
    %v1212 = vadd.f32 %v1208, 1e-06
    %v1213 = vrcp.pop %v1209
    %v1214 = vmul.f32 %v1209, %v1213
    %v1215 = vsub.f32 1.0, %v1214
    %v1216 = vmul.f32 %v1213, %v1215
    %v1217 = vadd.f32 %v1213, %v1216
    %vm1218 = vweird.f32 %v1209
    %vm1219 = vweird.f32 %v1213
    %vm1220 = vmor %vm1218, %vm1219
    %v1221 = vsel %vm1220, %v1213, %v1217
    %v1222 = vand.u32 2147483647, %v1209
    %vm1223 = vcmp.eq.f32.partialorder %v1222, 8.507059e+37
    %v1224 = vand.u32 %v1209, 2147483648
    %v1225 = vor.u32 1.1754944e-38, %v1224
    %v1226 = vsel %vm1223, %v1225, %v1221
    %v1227 = vmul.f32 1.0, %v1226
    %v1228 = vrcp.pop %v1210
    %v1229 = vmul.f32 %v1210, %v1228
    %v1230 = vsub.f32 1.0, %v1229
    %v1231 = vmul.f32 %v1228, %v1230
    %v1232 = vadd.f32 %v1228, %v1231
    %vm1233 = vweird.f32 %v1210
    %vm1234 = vweird.f32 %v1228
    %vm1235 = vmor %vm1233, %vm1234
    %v1236 = vsel %vm1235, %v1228, %v1232
    %v1237 = vand.u32 2147483647, %v1210
    %vm1238 = vcmp.eq.f32.partialorder %v1237, 8.507059e+37
    %v1239 = vand.u32 %v1210, 2147483648
    %v1240 = vor.u32 1.1754944e-38, %v1239
    %v1241 = vsel %vm1238, %v1240, %v1236
    %v1242 = vmul.f32 1.0, %v1241
    %v1243 = vrcp.pop %v1211
    %v1244 = vmul.f32 %v1211, %v1243
    %v1245 = vsub.f32 1.0, %v1244
    %v1246 = vmul.f32 %v1243, %v1245
    %v1247 = vadd.f32 %v1243, %v1246
    %vm1248 = vweird.f32 %v1211
    %vm1249 = vweird.f32 %v1243
    %vm1250 = vmor %vm1248, %vm1249
    %v1251 = vsel %vm1250, %v1243, %v1247
    %v1252 = vand.u32 2147483647, %v1211
    %vm1253 = vcmp.eq.f32.partialorder %v1252, 8.507059e+37
    %v1254 = vand.u32 %v1211, 2147483648
    %v1255 = vor.u32 1.1754944e-38, %v1254
    %v1256 = vsel %vm1253, %v1255, %v1251
    %v1257 = vmul.f32 1.0, %v1256
    %v1258 = vrcp.pop %v1212
    %v1259 = vmul.f32 %v1212, %v1258
    %v1260 = vsub.f32 1.0, %v1259
    %v1261 = vmul.f32 %v1258, %v1260
    %v1262 = vadd.f32 %v1258, %v1261
    %vm1263 = vweird.f32 %v1212
    %vm1264 = vweird.f32 %v1258
    %vm1265 = vmor %vm1263, %vm1264
    %v1266 = vsel %vm1265, %v1258, %v1262
    %v1267 = vand.u32 2147483647, %v1212
    %vm1268 = vcmp.eq.f32.partialorder %v1267, 8.507059e+37
    %v1269 = vand.u32 %v1212, 2147483648
    %v1270 = vor.u32 1.1754944e-38, %v1269
    %v1271 = vsel %vm1268, %v1270, %v1266
    %v1272 = vmul.f32 1.0, %v1271
    %v1273 = vmul.f32 %v1145, %v1227
    %v1274 = vmul.f32 %v1146, %v1242
    %v1275 = vmul.f32 %v1147, %v1257
    %v1276 = vmul.f32 %v1148, %v1272
    %v1277 = vpack.c.bf16 %v1273, %v1273
    %v1278 = vpack.c.bf16 %v1274, %v1274
    %v1279 = vpack.c.bf16 %v1275, %v1275
    %v1280 = vpack.c.bf16 %v1276, %v1276
    %v1281 = vld [vmem:[%s10] sm:$0xf]
    %v1282 = vld [vmem:[%s10 + $0x4] sm:$0xf]
    %v1283 = vld [vmem:[%s10 + $0x8] sm:$0xf]
    %v1284 = vld [vmem:[%s10 + $0xc] sm:$0xf]
    %v1285 = vld [vmem:[%s10 + $0x10] sm:$0xf]
    %v1286 = vld [vmem:[%s10 + $0x14] sm:$0xf]
    %v1287 = vld [vmem:[%s10 + $0x18] sm:$0xf]
    %v1288 = vld [vmem:[%s10 + $0x1c] sm:$0xf]
    %v1289 = vld [vmem:[%s10 + $0x20] sm:$0xf]
    %v1290 = vld [vmem:[%s10 + $0x24] sm:$0xf]
    %v1291 = vld [vmem:[%s10 + $0x28] sm:$0xf]
    %v1292 = vld [vmem:[%s10 + $0x2c] sm:$0xf]
    %v1293 = vld [vmem:[%s10 + $0x30] sm:$0xf]
    %v1294 = vld [vmem:[%s10 + $0x34] sm:$0xf]
    %v1295 = vld [vmem:[%s10 + $0x38] sm:$0xf]
    %v1296 = vld [vmem:[%s10 + $0x3c] sm:$0xf]
    %v1297 = vld [vmem:[#allocation13] sm:$0x1]
    %v1299 = vperm.slane %v1297, 0
    %v1305 = vunpack.c.l.b16 %v1277
    %v1306 = vunpack.c.l.b16 %v1278
    %v1307 = vunpack.c.l.b16 %v1279
    %v1308 = vunpack.c.l.b16 %v1280
    %v1309 = vpack.c.b16 %v1306, %v1305
    %v1310 = vpack.c.b16 %v1308, %v1307
    %v1329 = vunpack.c.l.b16 %v1281
    %v1330 = vunpack.c.l.b16 %v1282
    %v1331 = vunpack.c.l.b16 %v1283
    %v1332 = vunpack.c.l.b16 %v1284
    %v1333 = vunpack.c.l.b16 %v1285
    %v1334 = vunpack.c.l.b16 %v1286
    %v1335 = vunpack.c.l.b16 %v1287
    %v1336 = vunpack.c.l.b16 %v1288
    %v1337 = vunpack.c.l.b16 %v1289
    %v1338 = vunpack.c.l.b16 %v1290
    %v1339 = vunpack.c.l.b16 %v1291
    %v1340 = vunpack.c.l.b16 %v1292
    %v1341 = vunpack.c.l.b16 %v1293
    %v1342 = vunpack.c.l.b16 %v1294
    %v1343 = vunpack.c.l.b16 %v1295
    %v1344 = vunpack.c.l.b16 %v1296
    %v1345 = vpack.c.b16 %v1330, %v1329
    %v1346 = vpack.c.b16 %v1332, %v1331
    %v1347 = vpack.c.b16 %v1334, %v1333
    %v1348 = vpack.c.b16 %v1336, %v1335
    %v1349 = vpack.c.b16 %v1338, %v1337
    %v1350 = vpack.c.b16 %v1340, %v1339
    %v1351 = vpack.c.b16 %v1342, %v1341
    %v1352 = vpack.c.b16 %v1344, %v1343
    %1361 = vmatpush.bf16.msra.mxu0 %v1352
    %1362 = vmatpush.bf16.msra.mxu0 %v1351
    %1363 = vmatpush.bf16.msra.mxu0 %v1350
    %1364 = vmatpush.bf16.msra.mxu0 %v1349
    %1365 = vmatpush.bf16.msra.mxu0 %v1348
    %1366 = vmatpush.bf16.msra.mxu0 %v1347
    %1367 = vmatpush.bf16.msra.mxu0 %v1346
    %1368 = vmatpush.bf16.msra.mxu0 %v1345
    %1369 = vmatmul.bf16.gmra.mxu0 %v1309
    %v1370 = vpop.f32.mrf.mxu0
    %v1371 = vadd.f32 %v1299, %v1370
    %v1372 = vpop.f32.mrf.mxu0
    %v1373 = vadd.f32 %v1299, %v1372
    %1374 = vmatmul.bf16.gmra.mxu0 %v1310
    %v1375 = vpop.f32.mrf.mxu0
    %v1376 = vadd.f32 %v1299, %v1375
    %v1377 = vpop.f32.mrf.mxu0
    %v1378 = vadd.f32 %v1299, %v1377
    %1379 = vdwg.mxu0
    %v1380 = vmax.f32 %v1371, 0.0
    %v1381 = vmax.f32 %v1373, 0.0
    %v1382 = vmax.f32 %v1376, 0.0
    %v1383 = vmax.f32 %v1378, 0.0
    %v1384 = vpack.c.bf16 %v1380, %v1380
    %v1385 = vpack.c.bf16 %v1381, %v1381
    %v1386 = vpack.c.bf16 %v1382, %v1382
    %v1387 = vpack.c.bf16 %v1383, %v1383
    %v1388 = vld [vmem:[%s9] sm:$0xff]
    %v1389 = vld [vmem:[%s9 + $0x8] sm:$0xff]
    %v1390 = vld [vmem:[%s9 + $0x10] sm:$0xff]
    %v1391 = vld [vmem:[%s9 + $0x18] sm:$0xff]
    %v1392 = vld [vmem:[%s9 + $0x20] sm:$0xff]
    %v1393 = vld [vmem:[%s9 + $0x28] sm:$0xff]
    %v1394 = vld [vmem:[%s9 + $0x30] sm:$0xff]
    %v1395 = vld [vmem:[%s9 + $0x38] sm:$0xff]
    %v1396 = vld [vmem:[%s9 + $0x40] sm:$0xff]
    %v1397 = vld [vmem:[%s9 + $0x48] sm:$0xff]
    %v1398 = vld [vmem:[%s9 + $0x50] sm:$0xff]
    %v1399 = vld [vmem:[%s9 + $0x58] sm:$0xff]
    %v1400 = vld [vmem:[%s9 + $0x60] sm:$0xff]
    %v1401 = vld [vmem:[%s9 + $0x68] sm:$0xff]
    %v1402 = vld [vmem:[%s9 + $0x70] sm:$0xff]
    %v1403 = vld [vmem:[%s9 + $0x78] sm:$0xff]
    %v1404 = vld [vmem:[%s9 + $0x80] sm:$0xff]
    %v1405 = vld [vmem:[%s9 + $0x88] sm:$0xff]
    %1406 = vset.pattern.permute.xlu0 0
    %1407 = vperm.xlu0 %1406, %v1388
    %v1408 = vpop.permute.xlu0 %1407
    %1409 = vset.pattern.permute.xlu0 0
    %1410 = vperm.xlu0 %1409, %v1389
    %v1411 = vpop.permute.xlu0 %1410
    %1412 = vset.pattern.permute.xlu0 0
    %1413 = vperm.xlu0 %1412, %v1390
    %v1414 = vpop.permute.xlu0 %1413
    %1415 = vset.pattern.permute.xlu0 0
    %1416 = vperm.xlu0 %1415, %v1391
    %v1417 = vpop.permute.xlu0 %1416
    %1418 = vset.pattern.permute.xlu0 0
    %1419 = vperm.xlu0 %1418, %v1392
    %v1420 = vpop.permute.xlu0 %1419
    %1421 = vset.pattern.permute.xlu0 0
    %1422 = vperm.xlu0 %1421, %v1393
    %v1423 = vpop.permute.xlu0 %1422
    %1424 = vset.pattern.permute.xlu0 0
    %1425 = vperm.xlu0 %1424, %v1394
    %v1426 = vpop.permute.xlu0 %1425
    %1427 = vset.pattern.permute.xlu0 0
    %1428 = vperm.xlu0 %1427, %v1395
    %v1429 = vpop.permute.xlu0 %1428
    %1430 = vset.pattern.permute.xlu0 0
    %1431 = vperm.xlu0 %1430, %v1396
    %v1432 = vpop.permute.xlu0 %1431
    %1433 = vset.pattern.permute.xlu0 0
    %1434 = vperm.xlu0 %1433, %v1397
    %v1435 = vpop.permute.xlu0 %1434
    %1436 = vset.pattern.permute.xlu0 0
    %1437 = vperm.xlu0 %1436, %v1398
    %v1438 = vpop.permute.xlu0 %1437
    %1439 = vset.pattern.permute.xlu0 0
    %1440 = vperm.xlu0 %1439, %v1399
    %v1441 = vpop.permute.xlu0 %1440
    %1442 = vset.pattern.permute.xlu0 0
    %1443 = vperm.xlu0 %1442, %v1400
    %v1444 = vpop.permute.xlu0 %1443
    %1445 = vset.pattern.permute.xlu0 0
    %1446 = vperm.xlu0 %1445, %v1401
    %v1447 = vpop.permute.xlu0 %1446
    %1448 = vset.pattern.permute.xlu0 0
    %1449 = vperm.xlu0 %1448, %v1402
    %v1450 = vpop.permute.xlu0 %1449
    %1451 = vset.pattern.permute.xlu0 0
    %1452 = vperm.xlu0 %1451, %v1403
    %v1453 = vpop.permute.xlu0 %1452
    %1454 = vset.pattern.permute.xlu0 0
    %1455 = vperm.xlu0 %1454, %v1404
    %v1456 = vpop.permute.xlu0 %1455
    %1457 = vset.pattern.permute.xlu0 0
    %1458 = vperm.xlu0 %1457, %v1405
    %v1459 = vpop.permute.xlu0 %1458
    %vm1460 = vcmp.eq.s32.totalorder %v1408, %v357
    %vm1461 = vcmp.eq.s32.totalorder %v1411, %v357
    %vm1462 = vcmp.eq.s32.totalorder %v1414, %v357
    %vm1463 = vcmp.eq.s32.totalorder %v1417, %v357
    %vm1464 = vcmp.eq.s32.totalorder %v1420, %v357
    %vm1465 = vcmp.eq.s32.totalorder %v1423, %v357
    %vm1466 = vcmp.eq.s32.totalorder %v1426, %v357
    %vm1467 = vcmp.eq.s32.totalorder %v1429, %v357
    %vm1468 = vcmp.eq.s32.totalorder %v1432, %v357
    %vm1469 = vcmp.eq.s32.totalorder %v1435, %v357
    %vm1470 = vcmp.eq.s32.totalorder %v1438, %v357
    %vm1471 = vcmp.eq.s32.totalorder %v1441, %v357
    %vm1472 = vcmp.eq.s32.totalorder %v1444, %v357
    %vm1473 = vcmp.eq.s32.totalorder %v1447, %v357
    %vm1474 = vcmp.eq.s32.totalorder %v1450, %v357
    %vm1475 = vcmp.eq.s32.totalorder %v1453, %v357
    %vm1476 = vcmp.eq.s32.totalorder %v1456, %v357
    %vm1477 = vcmp.eq.s32.totalorder %v1459, %v357
    %v1478 = vsel %vm1460, 1, 0
    %v1479 = vsel %vm1461, 1, 0
    %v1480 = vsel %vm1462, 1, 0
    %v1481 = vsel %vm1463, 1, 0
    %v1482 = vsel %vm1464, 1, 0
    %v1483 = vsel %vm1465, 1, 0
    %v1484 = vsel %vm1466, 1, 0
    %v1485 = vsel %vm1467, 1, 0
    %v1486 = vsel %vm1468, 1, 0
    %v1487 = vsel %vm1469, 1, 0
    %v1488 = vsel %vm1470, 1, 0
    %v1489 = vsel %vm1471, 1, 0
    %v1490 = vsel %vm1472, 1, 0
    %v1491 = vsel %vm1473, 1, 0
    %v1492 = vsel %vm1474, 1, 0
    %v1493 = vsel %vm1475, 1, 0
    %v1494 = vsel %vm1476, 1, 0
    %v1495 = vsel %vm1477, 1, 0
    %v1496 = vcvt.s32.f32 %v1478
    %v1497 = vcvt.s32.f32 %v1479
    %v1498 = vcvt.s32.f32 %v1480
    %v1499 = vcvt.s32.f32 %v1481
    %v1500 = vcvt.s32.f32 %v1482
    %v1501 = vcvt.s32.f32 %v1483
    %v1502 = vcvt.s32.f32 %v1484
    %v1503 = vcvt.s32.f32 %v1485
    %v1504 = vcvt.s32.f32 %v1486
    %v1505 = vcvt.s32.f32 %v1487
    %v1506 = vcvt.s32.f32 %v1488
    %v1507 = vcvt.s32.f32 %v1489
    %v1508 = vcvt.s32.f32 %v1490
    %v1509 = vcvt.s32.f32 %v1491
    %v1510 = vcvt.s32.f32 %v1492
    %v1511 = vcvt.s32.f32 %v1493
    %v1512 = vcvt.s32.f32 %v1494
    %v1513 = vcvt.s32.f32 %v1495
    %v1514 = vpack.c.bf16 %v1497, %v1496
    %v1515 = vpack.c.bf16 %v1499, %v1498
    %v1516 = vpack.c.bf16 %v1501, %v1500
    %v1517 = vpack.c.bf16 %v1503, %v1502
    %v1518 = vpack.c.bf16 %v1505, %v1504
    %v1519 = vpack.c.bf16 %v1507, %v1506
    %v1520 = vpack.c.bf16 %v1509, %v1508
    %v1521 = vpack.c.bf16 %v1511, %v1510
    %v1522 = vpack.c.bf16 %v1513, %v1512
    %v1527 = vunpack.c.l.b16 %v1384
    %v1528 = vunpack.c.l.b16 %v1385
    %v1529 = vunpack.c.l.b16 %v1386
    %v1530 = vunpack.c.l.b16 %v1387
    %v1531 = vpack.c.b16 %v1528, %v1527
    %v1532 = vpack.c.b16 %v1530, %v1529
    %vm1535 = vcmask 261120
    %v1537 = vsel %vm1535, %v1514, 0
    %v1540 = vsel %vm1535, %v1515, 0
    %v1543 = vsel %vm1535, %v1516, 0
    %v1546 = vsel %vm1535, %v1517, 0
    %v1549 = vsel %vm1535, %v1518, 0
    %v1552 = vsel %vm1535, %v1519, 0
    %v1555 = vsel %vm1535, %v1520, 0
    %v1558 = vsel %vm1535, %v1521, 0
    %v1561 = vsel %vm1535, %v1522, 0
    %1563 = vmatpush.bf16.msra.mxu0 0
    %1564 = vmatpush.bf16.msra.mxu0 0
    %1565 = vmatpush.bf16.msra.mxu0 0
    %1566 = vmatpush.bf16.msra.mxu0 0
    %1567 = vmatpush.bf16.msra.mxu0 0
    %1568 = vmatpush.bf16.msra.mxu0 0
    %1569 = vmatpush.bf16.msra.mxu0 %v1310
    %1570 = vmatpush.bf16.msra.mxu0 %v1309
    %1571 = vmatmul.bf16.gmra.mxu0 %v1537
    %v1572 = vpop.f32.mrf.mxu0
    %v1573 = vadd.f32 0.0, %v1572
    %v1574 = vpop.f32.mrf.mxu0
    %v1575 = vadd.f32 0.0, %v1574
    %1576 = vmatmul.bf16.gmra.mxu0 %v1540
    %v1577 = vpop.f32.mrf.mxu0
    %v1578 = vpop.f32.mrf.mxu0
    %1579 = vmatmul.bf16.gmra.mxu0 %v1543
    %v1580 = vpop.f32.mrf.mxu0
    %v1581 = vpop.f32.mrf.mxu0
    %1582 = vmatmul.bf16.gmra.mxu0 %v1546
    %v1583 = vpop.f32.mrf.mxu0
    %v1584 = vpop.f32.mrf.mxu0
    %1585 = vmatmul.bf16.gmra.mxu0 %v1549
    %v1586 = vpop.f32.mrf.mxu0
    %v1587 = vpop.f32.mrf.mxu0
    %1588 = vmatmul.bf16.gmra.mxu0 %v1552
    %v1589 = vpop.f32.mrf.mxu0
    %v1590 = vpop.f32.mrf.mxu0
    %1591 = vmatmul.bf16.gmra.mxu0 %v1555
    %v1592 = vpop.f32.mrf.mxu0
    %v1593 = vpop.f32.mrf.mxu0
    %1594 = vmatmul.bf16.gmra.mxu0 %v1558
    %v1595 = vpop.f32.mrf.mxu0
    %v1596 = vpop.f32.mrf.mxu0
    %1597 = vmatmul.bf16.gmra.mxu0 %v1561
    %v1598 = vpop.f32.mrf.mxu0
    %v1599 = vpop.f32.mrf.mxu0
    %1600 = vdwg.mxu0
    %1601 = vmatpush.bf16.msra.mxu0 0
    %1602 = vmatpush.bf16.msra.mxu0 0
    %1603 = vmatpush.bf16.msra.mxu0 0
    %1604 = vmatpush.bf16.msra.mxu0 0
    %1605 = vmatpush.bf16.msra.mxu0 0
    %1606 = vmatpush.bf16.msra.mxu0 0
    %1607 = vmatpush.bf16.msra.mxu0 %v1532
    %1608 = vmatpush.bf16.msra.mxu0 %v1531
    %1609 = vmatmul.bf16.gmra.mxu0 %v1537
    %v1610 = vpop.f32.mrf.mxu0
    %v1611 = vpop.f32.mrf.mxu0
    %1612 = vmatmul.bf16.gmra.mxu0 %v1540
    %v1613 = vpop.f32.mrf.mxu0
    %v1614 = vadd.f32 0.0, %v1613
    %v1615 = vpop.f32.mrf.mxu0
    %v1616 = vadd.f32 0.0, %v1615
    %1617 = vmatmul.bf16.gmra.mxu0 %v1543
    %v1618 = vpop.f32.mrf.mxu0
    %v1619 = vadd.f32 0.0, %v1618
    %v1620 = vpop.f32.mrf.mxu0
    %v1621 = vadd.f32 0.0, %v1620
    %1622 = vmatmul.bf16.gmra.mxu0 %v1546
    %v1623 = vpop.f32.mrf.mxu0
    %v1624 = vadd.f32 0.0, %v1623
    %v1625 = vpop.f32.mrf.mxu0
    %v1626 = vadd.f32 0.0, %v1625
    %1627 = vmatmul.bf16.gmra.mxu0 %v1549
    %v1628 = vpop.f32.mrf.mxu0
    %v1629 = vadd.f32 0.0, %v1628
    %v1630 = vpop.f32.mrf.mxu0
    %v1631 = vadd.f32 0.0, %v1630
    %1632 = vmatmul.bf16.gmra.mxu0 %v1552
    %v1633 = vpop.f32.mrf.mxu0
    %v1634 = vadd.f32 0.0, %v1633
    %v1635 = vpop.f32.mrf.mxu0
    %v1636 = vadd.f32 0.0, %v1635
    %1637 = vmatmul.bf16.gmra.mxu0 %v1555
    %v1638 = vpop.f32.mrf.mxu0
    %v1639 = vadd.f32 0.0, %v1638
    %v1640 = vpop.f32.mrf.mxu0
    %v1641 = vadd.f32 0.0, %v1640
    %1642 = vmatmul.bf16.gmra.mxu0 %v1558
    %v1643 = vpop.f32.mrf.mxu0
    %v1644 = vadd.f32 0.0, %v1643
    %v1645 = vpop.f32.mrf.mxu0
    %v1646 = vadd.f32 0.0, %v1645
    %1647 = vmatmul.bf16.gmra.mxu0 %v1561
    %v1648 = vpop.f32.mrf.mxu0
    %v1649 = vadd.f32 0.0, %v1648
    %v1650 = vpop.f32.mrf.mxu0
    %v1651 = vadd.f32 0.0, %v1650
    %1652 = vdwg.mxu0
    %v1653 = vmax.f32 %v1614, %v1619
    %v1654 = vmax.f32 %v1616, %v1621
    %v1655 = vmax.f32 %v1624, %v1629
    %v1656 = vmax.f32 %v1626, %v1631
    %v1657 = vmax.f32 %v1634, %v1639
    %v1658 = vmax.f32 %v1636, %v1641
    %v1659 = vmax.f32 %v1644, %v1649
    %v1660 = vmax.f32 %v1646, %v1651
    %v1661 = vmax.f32 %v1653, %v1655
    %v1662 = vmax.f32 %v1654, %v1656
    %v1663 = vmax.f32 %v1657, %v1659
    %v1664 = vmax.f32 %v1658, %v1660
    %v1665 = vmax.f32 %v1661, %v1663
    %v1666 = vmax.f32 %v1662, %v1664
    %v1667 = vpack.c.bf16 %v1575, %v1573
    %v1668 = vpack.c.bf16 %v1666, %v1665
    %v1669 = vld [vmem:[%s12] sm:$0xf]
    %v1670 = vld [vmem:[%s12 + $0x4] sm:$0xf]
    %v1671 = vld [vmem:[%s12 + $0x8] sm:$0xf]
    %v1672 = vld [vmem:[%s12 + $0xc] sm:$0xf]
    %v1673 = vld [vmem:[%s12 + $0x10] sm:$0xf]
    %v1674 = vld [vmem:[%s12 + $0x14] sm:$0xf]
    %v1675 = vld [vmem:[%s12 + $0x18] sm:$0xf]
    %v1676 = vld [vmem:[%s12 + $0x1c] sm:$0xf]
    %v1677 = vld [vmem:[%s12 + $0x20] sm:$0xf]
    %v1678 = vld [vmem:[%s12 + $0x24] sm:$0xf]
    %v1679 = vld [vmem:[%s12 + $0x28] sm:$0xf]
    %v1680 = vld [vmem:[%s12 + $0x2c] sm:$0xf]
    %v1681 = vld [vmem:[%s12 + $0x30] sm:$0xf]
    %v1682 = vld [vmem:[%s12 + $0x34] sm:$0xf]
    %v1683 = vld [vmem:[%s12 + $0x38] sm:$0xf]
    %v1684 = vld [vmem:[%s12 + $0x3c] sm:$0xf]
    %v1685 = vld [vmem:[%s12 + $0x40] sm:$0xf]
    %v1686 = vld [vmem:[%s12 + $0x44] sm:$0xf]
    %v1687 = vld [vmem:[%s12 + $0x48] sm:$0xf]
    %v1688 = vld [vmem:[%s12 + $0x4c] sm:$0xf]
    %v1689 = vld [vmem:[%s12 + $0x50] sm:$0xf]
    %v1690 = vld [vmem:[%s12 + $0x54] sm:$0xf]
    %v1691 = vld [vmem:[%s12 + $0x58] sm:$0xf]
    %v1692 = vld [vmem:[%s12 + $0x5c] sm:$0xf]
    %v1693 = vld [vmem:[%s12 + $0x60] sm:$0xf]
    %v1694 = vld [vmem:[%s12 + $0x64] sm:$0xf]
    %v1695 = vld [vmem:[%s12 + $0x68] sm:$0xf]
    %v1696 = vld [vmem:[%s12 + $0x6c] sm:$0xf]
    %v1697 = vld [vmem:[%s12 + $0x70] sm:$0xf]
    %v1698 = vld [vmem:[%s12 + $0x74] sm:$0xf]
    %v1699 = vld [vmem:[%s12 + $0x78] sm:$0xf]
    %v1700 = vld [vmem:[%s12 + $0x7c] sm:$0xf]
    %v1701 = vld [vmem:[%s13] sm:$0x1]
    %v1703 = vperm.slane %v1701, 0
    %v1737 = vunpack.c.l.b16 %v1669
    %v1738 = vunpack.c.l.b16 %v1670
    %v1739 = vunpack.c.l.b16 %v1671
    %v1740 = vunpack.c.l.b16 %v1672
    %v1741 = vunpack.c.l.b16 %v1673
    %v1742 = vunpack.c.l.b16 %v1674
    %v1743 = vunpack.c.l.b16 %v1675
    %v1744 = vunpack.c.l.b16 %v1676
    %v1745 = vunpack.c.l.b16 %v1677
    %v1746 = vunpack.c.l.b16 %v1678
    %v1747 = vunpack.c.l.b16 %v1679
    %v1748 = vunpack.c.l.b16 %v1680
    %v1749 = vunpack.c.l.b16 %v1681
    %v1750 = vunpack.c.l.b16 %v1682
    %v1751 = vunpack.c.l.b16 %v1683
    %v1752 = vunpack.c.l.b16 %v1684
    %v1753 = vunpack.c.l.b16 %v1685
    %v1754 = vunpack.c.l.b16 %v1686
    %v1755 = vunpack.c.l.b16 %v1687
    %v1756 = vunpack.c.l.b16 %v1688
    %v1757 = vunpack.c.l.b16 %v1689
    %v1758 = vunpack.c.l.b16 %v1690
    %v1759 = vunpack.c.l.b16 %v1691
    %v1760 = vunpack.c.l.b16 %v1692
    %v1761 = vunpack.c.l.b16 %v1693
    %v1762 = vunpack.c.l.b16 %v1694
    %v1763 = vunpack.c.l.b16 %v1695
    %v1764 = vunpack.c.l.b16 %v1696
    %v1765 = vunpack.c.l.b16 %v1697
    %v1766 = vunpack.c.l.b16 %v1698
    %v1767 = vunpack.c.l.b16 %v1699
    %v1768 = vunpack.c.l.b16 %v1700
    %v1769 = vpack.c.b16 %v1738, %v1737
    %v1770 = vpack.c.b16 %v1740, %v1739
    %v1771 = vpack.c.b16 %v1742, %v1741
    %v1772 = vpack.c.b16 %v1744, %v1743
    %v1773 = vpack.c.b16 %v1746, %v1745
    %v1774 = vpack.c.b16 %v1748, %v1747
    %v1775 = vpack.c.b16 %v1750, %v1749
    %v1776 = vpack.c.b16 %v1752, %v1751
    %v1777 = vpack.c.b16 %v1754, %v1753
    %v1778 = vpack.c.b16 %v1756, %v1755
    %v1779 = vpack.c.b16 %v1758, %v1757
    %v1780 = vpack.c.b16 %v1760, %v1759
    %v1781 = vpack.c.b16 %v1762, %v1761
    %v1782 = vpack.c.b16 %v1764, %v1763
    %v1783 = vpack.c.b16 %v1766, %v1765
    %v1784 = vpack.c.b16 %v1768, %v1767
    %1801 = vmatpush.bf16.msra.mxu0 %v1776
    %1802 = vmatpush.bf16.msra.mxu0 %v1775
    %1803 = vmatpush.bf16.msra.mxu0 %v1774
    %1804 = vmatpush.bf16.msra.mxu0 %v1773
    %1805 = vmatpush.bf16.msra.mxu0 %v1772
    %1806 = vmatpush.bf16.msra.mxu0 %v1771
    %1807 = vmatpush.bf16.msra.mxu0 %v1770
    %1808 = vmatpush.bf16.msra.mxu0 %v1769
    %1809 = vmatmul.bf16.gmra.mxu0 %v1667
    %v1810 = vpop.f32.mrf.mxu0
    %v1811 = vadd.f32 %v1703, %v1810
    %v1812 = vpop.f32.mrf.mxu0
    %v1813 = vadd.f32 %v1703, %v1812
    %1814 = vdwg.mxu0
    %1815 = vmatpush.bf16.msra.mxu0 %v1784
    %1816 = vmatpush.bf16.msra.mxu0 %v1783
    %1817 = vmatpush.bf16.msra.mxu0 %v1782
    %1818 = vmatpush.bf16.msra.mxu0 %v1781
    %1819 = vmatpush.bf16.msra.mxu0 %v1780
    %1820 = vmatpush.bf16.msra.mxu0 %v1779
    %1821 = vmatpush.bf16.msra.mxu0 %v1778
    %1822 = vmatpush.bf16.msra.mxu0 %v1777
    %1823 = vmatmul.bf16.gmra.mxu0 %v1668
    %v1824 = vpop.f32.mrf.mxu0
    %v1825 = vadd.f32 %v1811, %v1824
    %v1826 = vpop.f32.mrf.mxu0
    %v1827 = vadd.f32 %v1813, %v1826
    %1828 = vdwg.mxu0
    %v1829 = vmax.f32 %v1825, 0.0
    %v1830 = vmax.f32 %v1827, 0.0
    %v1831 = vadd.f32 %v1829, %v1830
    %v1832 = vrot.slane %v1831, 4
    %v1833 = vadd.f32 %v1831, %v1832
    %v1834 = vrot.slane %v1833, 2
    %v1835 = vadd.f32 %v1833, %v1834
    %v1836 = vrot.slane %v1835, 1
    %v1837 = vadd.f32 %v1835, %v1836
    %v1838 = vrcp.pop 16.0
    %v1839 = vmul.f32 16.0, %v1838
    %v1840 = vsub.f32 1.0, %v1839
    %v1841 = vmul.f32 %v1838, %v1840
    %v1842 = vadd.f32 %v1838, %v1841
    %vm1843 = vweird.f32 %v1838
    %v1844 = vsel %vm1843, %v1838, %v1842
    %v1845 = vmul.f32 %v1837, %v1844
    %v1846 = vsub.f32 %v1829, %v1845
    %v1847 = vsub.f32 %v1830, %v1845
    %v1848 = vmul.f32 %v1846, %v1846
    %v1849 = vmul.f32 %v1847, %v1847
    %v1850 = vadd.f32 %v1848, %v1849
    %v1851 = vrot.slane %v1850, 4
    %v1852 = vadd.f32 %v1850, %v1851
    %v1853 = vrot.slane %v1852, 2
    %v1854 = vadd.f32 %v1852, %v1853
    %v1855 = vrot.slane %v1854, 1
    %v1856 = vadd.f32 %v1854, %v1855
    %v1857 = vmul.f32 %v1856, %v1844
    %v1858 = vadd.f32 %v1857, 1e-05
    %v1859 = vrsqrt.pop %v1858
    %v1860 = vmul.f32 %v1859, %v1858
    %v1861 = vmul.f32 %v1860, %v1859
    %v1862 = vmul.f32 0.5, %v1861
    %v1863 = vsub.f32 1.5, %v1862
    %v1864 = vmul.f32 %v1859, %v1863
    %vm1865 = vweird.f32 %v1858
    %vm1866 = vweird.f32 %v1859
    %vm1867 = vmor %vm1865, %vm1866
    %v1868 = vsel %vm1867, %v1859, %v1864
    %v1869 = vmul.f32 %v1846, %v1868
    %v1870 = vmul.f32 %v1847, %v1868
    %v1871 = vld [vmem:[%s14] sm:$0x1]
    %v1873 = vperm.slane %v1871, 0
    %v1875 = vmul.f32 %v1869, %v1873
    %v1876 = vmul.f32 %v1870, %v1873
    %v1877 = vld [vmem:[%s15] sm:$0x1]
    %v1879 = vperm.slane %v1877, 0
    %v1881 = vadd.f32 %v1875, %v1879
    %v1882 = vadd.f32 %v1876, %v1879
    %v1883 = vld [vmem:[#allocation14] sm:$0xff]
    %v1884 = vld [vmem:[#allocation14 + $0x8] sm:$0xff]
    %v1885 = vmul.f32 %v1881, %v1883
    %v1886 = vmul.f32 %v1882, %v1884
    %v1887 = vmul.f32 %v1885, %v1885
    %v1888 = vmul.f32 %v1886, %v1886
    %1889 = vadd.xlane.f32.xlu0 %v1887
    %v1890 = vpop.xlane.xlu0 %1889
    %1891 = vadd.xlane.f32.xlu0 %v1888
    %v1892 = vpop.xlane.xlu0 %1891
    %v1893 = vrsqrt.pop %v1890
    %v1894 = vmul.f32 %v1893, %v1890
    %v1895 = vmul.f32 %v1894, %v1893
    %v1896 = vmul.f32 0.5, %v1895
    %v1897 = vsub.f32 1.5, %v1896
    %v1898 = vmul.f32 %v1893, %v1897
    %v1899 = vmul.f32 %v1890, %v1898
    %vm1900 = vcmp.eq.f32.partialorder %v1890, inf
    %v1901 = vsel %vm1900, %v1890, %v1899
    %vm1902 = vcmp.eq.f32.partialorder %v1890, 0.0
    %v1903 = vand.u32 %v1890, 2147483648
    %v1904 = vsel %vm1902, %v1903, %v1901
    %v1905 = vrsqrt.pop %v1892
    %v1906 = vmul.f32 %v1905, %v1892
    %v1907 = vmul.f32 %v1906, %v1905
    %v1908 = vmul.f32 0.5, %v1907
    %v1909 = vsub.f32 1.5, %v1908
    %v1910 = vmul.f32 %v1905, %v1909
    %v1911 = vmul.f32 %v1892, %v1910
    %vm1912 = vcmp.eq.f32.partialorder %v1892, inf
    %v1913 = vsel %vm1912, %v1892, %v1911
    %vm1914 = vcmp.eq.f32.partialorder %v1892, 0.0
    %v1915 = vand.u32 %v1892, 2147483648
    %v1916 = vsel %vm1914, %v1915, %v1913
    %v1917 = vadd.f32 %v1904, 1e-06
    %v1918 = vadd.f32 %v1916, 1e-06
    %v1919 = vrcp.pop %v1917
    %v1920 = vmul.f32 %v1917, %v1919
    %v1921 = vsub.f32 1.0, %v1920
    %v1922 = vmul.f32 %v1919, %v1921
    %v1923 = vadd.f32 %v1919, %v1922
    %vm1924 = vweird.f32 %v1917
    %vm1925 = vweird.f32 %v1919
    %vm1926 = vmor %vm1924, %vm1925
    %v1927 = vsel %vm1926, %v1919, %v1923
    %v1928 = vand.u32 2147483647, %v1917
    %vm1929 = vcmp.eq.f32.partialorder %v1928, 8.507059e+37
    %v1930 = vand.u32 %v1917, 2147483648
    %v1931 = vor.u32 1.1754944e-38, %v1930
    %v1932 = vsel %vm1929, %v1931, %v1927
    %v1933 = vmul.f32 1.0, %v1932
    %v1934 = vrcp.pop %v1918
    %v1935 = vmul.f32 %v1918, %v1934
    %v1936 = vsub.f32 1.0, %v1935
    %v1937 = vmul.f32 %v1934, %v1936
    %v1938 = vadd.f32 %v1934, %v1937
    %vm1939 = vweird.f32 %v1918
    %vm1940 = vweird.f32 %v1934
    %vm1941 = vmor %vm1939, %vm1940
    %v1942 = vsel %vm1941, %v1934, %v1938
    %v1943 = vand.u32 2147483647, %v1918
    %vm1944 = vcmp.eq.f32.partialorder %v1943, 8.507059e+37
    %v1945 = vand.u32 %v1918, 2147483648
    %v1946 = vor.u32 1.1754944e-38, %v1945
    %v1947 = vsel %vm1944, %v1946, %v1942
    %v1948 = vmul.f32 1.0, %v1947
    %v1949 = vmul.f32 %v1885, %v1933
    %v1950 = vmul.f32 %v1886, %v1948
    %v1951 = vpack.c.bf16 %v1949, %v1949
    %v1952 = vpack.c.bf16 %v1950, %v1950
    %v1953 = vld [vmem:[#allocation16] sm:$0xf]
    %v1954 = vld [vmem:[#allocation16 + $0x4] sm:$0xf]
    %v1955 = vld [vmem:[#allocation16 + $0x8] sm:$0xf]
    %v1956 = vld [vmem:[#allocation16 + $0xc] sm:$0xf]
    %v1957 = vld [vmem:[#allocation16 + $0x10] sm:$0xf]
    %v1958 = vld [vmem:[#allocation16 + $0x14] sm:$0xf]
    %v1959 = vld [vmem:[#allocation16 + $0x18] sm:$0xf]
    %v1960 = vld [vmem:[#allocation16 + $0x1c] sm:$0xf]
    %v1961 = vld [vmem:[#allocation16 + $0x20] sm:$0xf]
    %v1962 = vld [vmem:[#allocation16 + $0x24] sm:$0xf]
    %v1963 = vld [vmem:[#allocation16 + $0x28] sm:$0xf]
    %v1964 = vld [vmem:[#allocation16 + $0x2c] sm:$0xf]
    %v1965 = vld [vmem:[#allocation16 + $0x30] sm:$0xf]
    %v1966 = vld [vmem:[#allocation16 + $0x34] sm:$0xf]
    %v1967 = vld [vmem:[#allocation16 + $0x38] sm:$0xf]
    %v1968 = vld [vmem:[#allocation16 + $0x3c] sm:$0xf]
    %v1969 = vld [vmem:[%s19] sm:$0x1]
    %v1971 = vperm.slane %v1969, 0
    %v1975 = vunpack.c.l.b16 %v1951
    %v1976 = vunpack.c.l.b16 %v1952
    %v1977 = vpack.c.b16 %v1976, %v1975
    %v1995 = vunpack.c.l.b16 %v1953
    %v1996 = vunpack.c.l.b16 %v1954
    %v1997 = vunpack.c.l.b16 %v1955
    %v1998 = vunpack.c.l.b16 %v1956
    %v1999 = vunpack.c.l.b16 %v1957
    %v2000 = vunpack.c.l.b16 %v1958
    %v2001 = vunpack.c.l.b16 %v1959
    %v2002 = vunpack.c.l.b16 %v1960
    %v2003 = vunpack.c.l.b16 %v1961
    %v2004 = vunpack.c.l.b16 %v1962
    %v2005 = vunpack.c.l.b16 %v1963
    %v2006 = vunpack.c.l.b16 %v1964
    %v2007 = vunpack.c.l.b16 %v1965
    %v2008 = vunpack.c.l.b16 %v1966
    %v2009 = vunpack.c.l.b16 %v1967
    %v2010 = vunpack.c.l.b16 %v1968
    %v2011 = vpack.c.b16 %v1996, %v1995
    %v2012 = vpack.c.b16 %v1998, %v1997
    %v2013 = vpack.c.b16 %v2000, %v1999
    %v2014 = vpack.c.b16 %v2002, %v2001
    %v2015 = vpack.c.b16 %v2004, %v2003
    %v2016 = vpack.c.b16 %v2006, %v2005
    %v2017 = vpack.c.b16 %v2008, %v2007
    %v2018 = vpack.c.b16 %v2010, %v2009
    %2027 = vmatpush.bf16.msra.mxu0 %v2018
    %2028 = vmatpush.bf16.msra.mxu0 %v2017
    %2029 = vmatpush.bf16.msra.mxu0 %v2016
    %2030 = vmatpush.bf16.msra.mxu0 %v2015
    %2031 = vmatpush.bf16.msra.mxu0 %v2014
    %2032 = vmatpush.bf16.msra.mxu0 %v2013
    %2033 = vmatpush.bf16.msra.mxu0 %v2012
    %2034 = vmatpush.bf16.msra.mxu0 %v2011
    %2035 = vmatmul.bf16.gmra.mxu0 %v1977
    %v2036 = vpop.f32.mrf.mxu0
    %v2037 = vadd.f32 %v1971, %v2036
    %v2038 = vpop.f32.mrf.mxu0
    %v2039 = vadd.f32 %v1971, %v2038
    %2040 = vdwg.mxu0
    %v2041 = vmax.f32 %v2037, 0.0
    %v2042 = vmax.f32 %v2039, 0.0
    %v2043 = vpack.c.bf16 %v2041, %v2041
    %v2044 = vpack.c.bf16 %v2042, %v2042
    %v2045 = vld [vmem:[%s17] sm:$0xff]
    %v2046 = vld [vmem:[%s17 + $0x8] sm:$0xff]
    %v2047 = vld [vmem:[%s17 + $0x10] sm:$0xff]
    %v2048 = vld [vmem:[%s17 + $0x18] sm:$0xff]
    %v2049 = vld [vmem:[%s17 + $0x20] sm:$0xff]
    %v2050 = vld [vmem:[%s17 + $0x28] sm:$0xff]
    %v2051 = vld [vmem:[%s17 + $0x30] sm:$0xff]
    %v2052 = vld [vmem:[%s17 + $0x38] sm:$0xff]
    %v2053 = vld [vmem:[%s17 + $0x40] sm:$0xff]
    %2054 = vset.pattern.permute.xlu0 0
    %2055 = vperm.xlu0 %2054, %v2045
    %v2056 = vpop.permute.xlu0 %2055
    %2057 = vset.pattern.permute.xlu0 0
    %2058 = vperm.xlu0 %2057, %v2046
    %v2059 = vpop.permute.xlu0 %2058
    %2060 = vset.pattern.permute.xlu0 0
    %2061 = vperm.xlu0 %2060, %v2047
    %v2062 = vpop.permute.xlu0 %2061
    %2063 = vset.pattern.permute.xlu0 0
    %2064 = vperm.xlu0 %2063, %v2048
    %v2065 = vpop.permute.xlu0 %2064
    %2066 = vset.pattern.permute.xlu0 0
    %2067 = vperm.xlu0 %2066, %v2049
    %v2068 = vpop.permute.xlu0 %2067
    %2069 = vset.pattern.permute.xlu0 0
    %2070 = vperm.xlu0 %2069, %v2050
    %v2071 = vpop.permute.xlu0 %2070
    %2072 = vset.pattern.permute.xlu0 0
    %2073 = vperm.xlu0 %2072, %v2051
    %v2074 = vpop.permute.xlu0 %2073
    %2075 = vset.pattern.permute.xlu0 0
    %2076 = vperm.xlu0 %2075, %v2052
    %v2077 = vpop.permute.xlu0 %2076
    %2078 = vset.pattern.permute.xlu0 0
    %2079 = vperm.xlu0 %2078, %v2053
    %v2080 = vpop.permute.xlu0 %2079
    %vm2081 = vcmp.eq.s32.totalorder %v2056, %v357
    %vm2082 = vcmp.eq.s32.totalorder %v2059, %v357
    %vm2083 = vcmp.eq.s32.totalorder %v2062, %v357
    %vm2084 = vcmp.eq.s32.totalorder %v2065, %v357
    %vm2085 = vcmp.eq.s32.totalorder %v2068, %v357
    %vm2086 = vcmp.eq.s32.totalorder %v2071, %v357
    %vm2087 = vcmp.eq.s32.totalorder %v2074, %v357
    %vm2088 = vcmp.eq.s32.totalorder %v2077, %v357
    %vm2089 = vcmp.eq.s32.totalorder %v2080, %v357
    %v2090 = vsel %vm2081, 1, 0
    %v2091 = vsel %vm2082, 1, 0
    %v2092 = vsel %vm2083, 1, 0
    %v2093 = vsel %vm2084, 1, 0
    %v2094 = vsel %vm2085, 1, 0
    %v2095 = vsel %vm2086, 1, 0
    %v2096 = vsel %vm2087, 1, 0
    %v2097 = vsel %vm2088, 1, 0
    %v2098 = vsel %vm2089, 1, 0
    %v2099 = vcvt.s32.f32 %v2090
    %v2100 = vcvt.s32.f32 %v2091
    %v2101 = vcvt.s32.f32 %v2092
    %v2102 = vcvt.s32.f32 %v2093
    %v2103 = vcvt.s32.f32 %v2094
    %v2104 = vcvt.s32.f32 %v2095
    %v2105 = vcvt.s32.f32 %v2096
    %v2106 = vcvt.s32.f32 %v2097
    %v2107 = vcvt.s32.f32 %v2098
    %v2108 = vpack.c.bf16 %v2100, %v2099
    %v2109 = vpack.c.bf16 %v2102, %v2101
    %v2110 = vpack.c.bf16 %v2104, %v2103
    %v2111 = vpack.c.bf16 %v2106, %v2105
    %v2112 = vpack.c.bf16 %v2107, %v2107
    %v2115 = vunpack.c.l.b16 %v2043
    %v2116 = vunpack.c.l.b16 %v2044
    %v2117 = vpack.c.b16 %v2116, %v2115
    %vm2119 = vcmask 130048
    %v2121 = vsel %vm2119, %v2108, 0
    %v2124 = vsel %vm2119, %v2109, 0
    %v2127 = vsel %vm2119, %v2110, 0
    %v2130 = vsel %vm2119, %v2111, 0
    %v2133 = vsel %vm2119, %v2112, 0
    %2135 = vmatpush.bf16.msra.mxu0 0
    %2136 = vmatpush.bf16.msra.mxu0 0
    %2137 = vmatpush.bf16.msra.mxu0 0
    %2138 = vmatpush.bf16.msra.mxu0 0
    %2139 = vmatpush.bf16.msra.mxu0 0
    %2140 = vmatpush.bf16.msra.mxu0 0
    %2141 = vmatpush.bf16.msra.mxu0 0
    %2142 = vmatpush.bf16.msra.mxu0 %v1977
    %2143 = vmatmul.bf16.gmra.mxu0 %v2121
    %v2144 = vpop.f32.mrf.mxu0
    %v2145 = vadd.f32 0.0, %v2144
    %v2146 = vpop.f32.mrf.mxu0
    %2147 = vmatmul.bf16.gmra.mxu0 %v2124
    %v2148 = vpop.f32.mrf.mxu0
    %v2149 = vpop.f32.mrf.mxu0
    %2150 = vmatmul.bf16.gmra.mxu0 %v2127
    %v2151 = vpop.f32.mrf.mxu0
    %v2152 = vpop.f32.mrf.mxu0
    %2153 = vmatmul.bf16.gmra.mxu0 %v2130
    %v2154 = vpop.f32.mrf.mxu0
    %v2155 = vpop.f32.mrf.mxu0
    %2156 = vmatmul.bf16.gmra.mxu0 %v2133
    %v2157 = vpop.f32.mrf.mxu0
    %v2158 = vpop.f32.mrf.mxu0
    %2159 = vdwg.mxu0
    %2160 = vmatpush.bf16.msra.mxu0 0
    %2161 = vmatpush.bf16.msra.mxu0 0
    %2162 = vmatpush.bf16.msra.mxu0 0
    %2163 = vmatpush.bf16.msra.mxu0 0
    %2164 = vmatpush.bf16.msra.mxu0 0
    %2165 = vmatpush.bf16.msra.mxu0 0
    %2166 = vmatpush.bf16.msra.mxu0 0
    %2167 = vmatpush.bf16.msra.mxu0 %v2117
    %2168 = vmatmul.bf16.gmra.mxu0 %v2121
    %v2169 = vpop.f32.mrf.mxu0
    %v2170 = vpop.f32.mrf.mxu0
    %v2171 = vadd.f32 0.0, %v2170
    %2172 = vmatmul.bf16.gmra.mxu0 %v2124
    %v2173 = vpop.f32.mrf.mxu0
    %v2174 = vadd.f32 0.0, %v2173
    %v2175 = vpop.f32.mrf.mxu0
    %v2176 = vadd.f32 0.0, %v2175
    %2177 = vmatmul.bf16.gmra.mxu0 %v2127
    %v2178 = vpop.f32.mrf.mxu0
    %v2179 = vadd.f32 0.0, %v2178
    %v2180 = vpop.f32.mrf.mxu0
    %v2181 = vadd.f32 0.0, %v2180
    %2182 = vmatmul.bf16.gmra.mxu0 %v2130
    %v2183 = vpop.f32.mrf.mxu0
    %v2184 = vadd.f32 0.0, %v2183
    %v2185 = vpop.f32.mrf.mxu0
    %v2186 = vadd.f32 0.0, %v2185
    %2187 = vmatmul.bf16.gmra.mxu0 %v2133
    %v2188 = vpop.f32.mrf.mxu0
    %v2189 = vadd.f32 0.0, %v2188
    %v2190 = vpop.f32.mrf.mxu0
    %2191 = vdwg.mxu0
    %v2192 = vmax.f32 %v2171, %v2174
    %v2193 = vmax.f32 %v2176, %v2179
    %v2194 = vmax.f32 %v2181, %v2184
    %v2195 = vmax.f32 %v2186, %v2189
    %v2196 = vmax.f32 %v2192, %v2193
    %v2197 = vmax.f32 %v2194, %v2195
    %v2198 = vmax.f32 %v2196, %v2197
    %v2199 = vpack.c.bf16 %v2145, %v2145
    %v2200 = vpack.c.bf16 %v2198, %v2198
    %v2201 = vld [vmem:[%s20] sm:$0xf]
    %v2202 = vld [vmem:[%s20 + $0x4] sm:$0xf]
    %v2203 = vld [vmem:[%s20 + $0x8] sm:$0xf]
    %v2204 = vld [vmem:[%s20 + $0xc] sm:$0xf]
    %v2205 = vld [vmem:[%s20 + $0x10] sm:$0xf]
    %v2206 = vld [vmem:[%s20 + $0x14] sm:$0xf]
    %v2207 = vld [vmem:[%s20 + $0x18] sm:$0xf]
    %v2208 = vld [vmem:[%s20 + $0x1c] sm:$0xf]
    %v2209 = vld [vmem:[%s20 + $0x20] sm:$0xf]
    %v2210 = vld [vmem:[%s20 + $0x24] sm:$0xf]
    %v2211 = vld [vmem:[%s20 + $0x28] sm:$0xf]
    %v2212 = vld [vmem:[%s20 + $0x2c] sm:$0xf]
    %v2213 = vld [vmem:[%s20 + $0x30] sm:$0xf]
    %v2214 = vld [vmem:[%s20 + $0x34] sm:$0xf]
    %v2215 = vld [vmem:[%s20 + $0x38] sm:$0xf]
    %v2216 = vld [vmem:[%s20 + $0x3c] sm:$0xf]
    %v2217 = vld [vmem:[%s20 + $0x40] sm:$0xf]
    %v2218 = vld [vmem:[%s20 + $0x44] sm:$0xf]
    %v2219 = vld [vmem:[%s20 + $0x48] sm:$0xf]
    %v2220 = vld [vmem:[%s20 + $0x4c] sm:$0xf]
    %v2221 = vld [vmem:[%s20 + $0x50] sm:$0xf]
    %v2222 = vld [vmem:[%s20 + $0x54] sm:$0xf]
    %v2223 = vld [vmem:[%s20 + $0x58] sm:$0xf]
    %v2224 = vld [vmem:[%s20 + $0x5c] sm:$0xf]
    %v2225 = vld [vmem:[%s20 + $0x60] sm:$0xf]
    %v2226 = vld [vmem:[%s20 + $0x64] sm:$0xf]
    %v2227 = vld [vmem:[%s20 + $0x68] sm:$0xf]
    %v2228 = vld [vmem:[%s20 + $0x6c] sm:$0xf]
    %v2229 = vld [vmem:[%s20 + $0x70] sm:$0xf]
    %v2230 = vld [vmem:[%s20 + $0x74] sm:$0xf]
    %v2231 = vld [vmem:[%s20 + $0x78] sm:$0xf]
    %v2232 = vld [vmem:[%s20 + $0x7c] sm:$0xf]
    %v2233 = vld [vmem:[%s21] sm:$0x1]
    %v2235 = vperm.slane %v2233, 0
    %v2269 = vunpack.c.l.b16 %v2201
    %v2270 = vunpack.c.l.b16 %v2202
    %v2271 = vunpack.c.l.b16 %v2203
    %v2272 = vunpack.c.l.b16 %v2204
    %v2273 = vunpack.c.l.b16 %v2205
    %v2274 = vunpack.c.l.b16 %v2206
    %v2275 = vunpack.c.l.b16 %v2207
    %v2276 = vunpack.c.l.b16 %v2208
    %v2277 = vunpack.c.l.b16 %v2209
    %v2278 = vunpack.c.l.b16 %v2210
    %v2279 = vunpack.c.l.b16 %v2211
    %v2280 = vunpack.c.l.b16 %v2212
    %v2281 = vunpack.c.l.b16 %v2213
    %v2282 = vunpack.c.l.b16 %v2214
    %v2283 = vunpack.c.l.b16 %v2215
    %v2284 = vunpack.c.l.b16 %v2216
    %v2285 = vunpack.c.l.b16 %v2217
    %v2286 = vunpack.c.l.b16 %v2218
    %v2287 = vunpack.c.l.b16 %v2219
    %v2288 = vunpack.c.l.b16 %v2220
    %v2289 = vunpack.c.l.b16 %v2221
    %v2290 = vunpack.c.l.b16 %v2222
    %v2291 = vunpack.c.l.b16 %v2223
    %v2292 = vunpack.c.l.b16 %v2224
    %v2293 = vunpack.c.l.b16 %v2225
    %v2294 = vunpack.c.l.b16 %v2226
    %v2295 = vunpack.c.l.b16 %v2227
    %v2296 = vunpack.c.l.b16 %v2228
    %v2297 = vunpack.c.l.b16 %v2229
    %v2298 = vunpack.c.l.b16 %v2230
    %v2299 = vunpack.c.l.b16 %v2231
    %v2300 = vunpack.c.l.b16 %v2232
    %v2301 = vpack.c.b16 %v2270, %v2269
    %v2302 = vpack.c.b16 %v2272, %v2271
    %v2303 = vpack.c.b16 %v2274, %v2273
    %v2304 = vpack.c.b16 %v2276, %v2275
    %v2305 = vpack.c.b16 %v2278, %v2277
    %v2306 = vpack.c.b16 %v2280, %v2279
    %v2307 = vpack.c.b16 %v2282, %v2281
    %v2308 = vpack.c.b16 %v2284, %v2283
    %v2309 = vpack.c.b16 %v2286, %v2285
    %v2310 = vpack.c.b16 %v2288, %v2287
    %v2311 = vpack.c.b16 %v2290, %v2289
    %v2312 = vpack.c.b16 %v2292, %v2291
    %v2313 = vpack.c.b16 %v2294, %v2293
    %v2314 = vpack.c.b16 %v2296, %v2295
    %v2315 = vpack.c.b16 %v2298, %v2297
    %v2316 = vpack.c.b16 %v2300, %v2299
    %2333 = vmatpush.bf16.msra.mxu0 %v2308
    %2334 = vmatpush.bf16.msra.mxu0 %v2307
    %2335 = vmatpush.bf16.msra.mxu0 %v2306
    %2336 = vmatpush.bf16.msra.mxu0 %v2305
    %2337 = vmatpush.bf16.msra.mxu0 %v2304
    %2338 = vmatpush.bf16.msra.mxu0 %v2303
    %2339 = vmatpush.bf16.msra.mxu0 %v2302
    %2340 = vmatpush.bf16.msra.mxu0 %v2301
    %2341 = vmatmul.bf16.gmra.mxu0 %v2199
    %v2342 = vpop.f32.mrf.mxu0
    %v2343 = vadd.f32 %v2235, %v2342
    %v2344 = vpop.f32.mrf.mxu0
    %2345 = vdwg.mxu0
    %2346 = vmatpush.bf16.msra.mxu0 %v2316
    %2347 = vmatpush.bf16.msra.mxu0 %v2315
    %2348 = vmatpush.bf16.msra.mxu0 %v2314
    %2349 = vmatpush.bf16.msra.mxu0 %v2313
    %2350 = vmatpush.bf16.msra.mxu0 %v2312
    %2351 = vmatpush.bf16.msra.mxu0 %v2311
    %2352 = vmatpush.bf16.msra.mxu0 %v2310
    %2353 = vmatpush.bf16.msra.mxu0 %v2309
    %2354 = vmatmul.bf16.gmra.mxu0 %v2200
    %v2355 = vpop.f32.mrf.mxu0
    %v2356 = vadd.f32 %v2343, %v2355
    %v2357 = vpop.f32.mrf.mxu0
    %2358 = vdwg.mxu0
    %2359 = vst [vmem:[#allocation17] sm:$0xff] %v2356
    // Predicated region
    $region126: #{tpu_custom_call.1} parent=1 // pred_check
      _
    $region127: #{tpu_custom_call.1} parent=1 // pred_check_branch
      %2361 = sbr.rel (0) target = $region129
    $region128: #{tpu_custom_call.1} parent=1 // pred_region
      %2363 = vsyncadd [#allocation4], 0
      %s2365 = sshll.u32 [#allocation17], 4
      %s2366 = int_to_ptr.vmem [resolvable:$true] %s2365
      %s2367 = sshll.u32 %s22, 4
      %s2368 = int_to_ptr.hbm [resolvable:$true] %s2367
      %2370 = dma.vmem_to_hbm [thread:$0]  %s2366, 128, %s2368, [#allocation4]
    $region129: #{tpu_custom_call.1} parent=1 // pred_fallthru
      _
    // Predicated region
    $region130: #{tpu_custom_call.1} parent=1 // pred_check
      _
    $region131: #{tpu_custom_call.1} parent=1 // pred_check_branch
      %2372 = sbr.rel (0) target = $region133
    $region132: #{tpu_custom_call.1} parent=1 // pred_region
      %2374 = dma.done [#allocation4], 128
    $region133: #{tpu_custom_call.1} parent=1 // pred_fallthru
      _
    %2375 = vsyncpa [#allocation3], 1
    %2376 = vsyncpa [#allocation6], 1
    %2377 = vsyncpa [#allocation9], 1
    %2378 = vsyncpa [#allocation12], 1
    %2379 = vsyncpa [#allocation15], 1
    %2380 = vsyncpa [#allocation4], 1

</llo_original>
